<compile_context>
chip_gen: v6e
topology: v6e:2x2x1
jax: 0.10.0
libtpu: 0.0.40
codegen_flags: <defaults>
</compile_context>

<pallas_src>
from functools import partial

import jax
import jax.numpy as jnp
from jax import lax
from jax.experimental import pallas as pl
from jax.experimental.pallas import tpu as pltpu


# --------------------------------------------------------------------------
# Pass 1: RMSNorm + Q/K/V projection (once per token).
# --------------------------------------------------------------------------
def _qkv_proj_kernel(x_ref, gamma_ref, wq_ref, wk_ref, wv_ref,
                     q_ref, k_ref, v_ref, *, scale_dim, compute_dtype):
    # F.normalize(x, dim=-1) * sqrt(dim) * gamma   (eps=1e-12 on the L2 norm)
    x = x_ref[0].astype(jnp.float32)
    ssq = jnp.sum(x * x, axis=-1, keepdims=True)
    inv = lax.rsqrt(jnp.maximum(ssq, 1e-24))
    xn = (x * inv * scale_dim * gamma_ref[...]).astype(compute_dtype)
    q_ref[0] = jnp.dot(xn, wq_ref[...],
                       preferred_element_type=jnp.float32).astype(q_ref.dtype)
    k_ref[0] = jnp.dot(xn, wk_ref[...],
                       preferred_element_type=jnp.float32).astype(k_ref.dtype)
    v_ref[0] = jnp.dot(xn, wv_ref[...],
                       preferred_element_type=jnp.float32).astype(v_ref.dtype)


# --------------------------------------------------------------------------
# Pass 2: flash-style attention over precomputed Q/K/V + memory tokens.
# --------------------------------------------------------------------------
def _attention_kernel(q_ref, k_ref, v_ref, memk_ref, memv_ref, w_out_ref,
                      o_ref, m_scr, l_scr, acc_scr,
                      *, heads, dim_head, num_mem, compute_dtype, exp_dtype,
                      approx_reciprocal):
    j = pl.program_id(2)
    tq = q_ref.shape[1]

    def attend(load_k, load_v, valid_mask=None):
        # One online-softmax update over a kv block, all heads.
        m_prev = m_scr[...]                                      # (TQ, H) f32
        m_cols, a_cols, sum_cols, pv_cols, a_full = [], [], [], [], []
        for h in range(heads):
            hs = h * dim_head
            q_h = q_ref[0, :, hs:hs + dim_head]                  # (TQ, d)
            k_h = load_k(hs)                                     # (TK, d)
            s = lax.dot_general(q_h, k_h, (((1,), (1,)), ((), ())),
                                preferred_element_type=jnp.float32)
            if valid_mask is not None:
                s = jnp.where(valid_mask, s, -jnp.inf)
            m_prev_h = m_prev[:, h:h + 1]
            m_new_h = jnp.maximum(m_prev_h, jnp.max(s, axis=-1, keepdims=True))
            alpha_h = jnp.exp(m_prev_h - m_new_h)                # (TQ, 1) f32
            # bf16 exp on v6e/v7x (EUP), f32 on v5e; row-sum accumulated f32.
            p = jnp.exp((s - m_new_h).astype(exp_dtype))
            psum_h = jnp.sum(p, axis=-1, keepdims=True, dtype=jnp.float32)
            pv_h = jnp.dot(p.astype(compute_dtype), load_v(hs),
                           preferred_element_type=jnp.float32)   # (TQ, d) f32
            m_cols.append(m_new_h)
            a_cols.append(alpha_h)
            sum_cols.append(psum_h)
            pv_cols.append(pv_h)
            a_full.append(jnp.broadcast_to(alpha_h, (tq, dim_head)))
        alpha = jnp.concatenate(a_cols, axis=-1)                 # (TQ, H)
        m_scr[...] = jnp.concatenate(m_cols, axis=-1)
        l_scr[...] = alpha * l_scr[...] + jnp.concatenate(sum_cols, axis=-1)
        # Single wide accumulator update per kv step (no per-head narrow RMW).
        acc_scr[...] = (jnp.concatenate(a_full, axis=-1) * acc_scr[...]
                        + jnp.concatenate(pv_cols, axis=-1))

    # ---- first kv step: init accumulators, attend the memory-KV slab ----
    @pl.when(j == 0)
    def _init():
        m_scr[...] = jnp.full(m_scr.shape, -jnp.inf, jnp.float32)
        l_scr[...] = jnp.zeros(l_scr.shape, jnp.float32)
        acc_scr[...] = jnp.zeros(acc_scr.shape, jnp.float32)
        m_pad = memk_ref.shape[0]
        if m_pad == num_mem:
            mask = None
        else:
            mask = lax.broadcasted_iota(jnp.int32, (1, m_pad), 1) < num_mem
        attend(lambda hs: memk_ref[:, hs:hs + dim_head],
               lambda hs: memv_ref[:, hs:hs + dim_head], mask)

    # ---- every kv step: attend the streamed K/V tile ----
    attend(lambda hs: k_ref[0, :, hs:hs + dim_head],
           lambda hs: v_ref[0, :, hs:hs + dim_head])

    # ---- last kv step: normalize and apply the output projection ----
    @pl.when(j == pl.num_programs(2) - 1)
    def _fin():
        l = l_scr[...]
        inv_l = pl.reciprocal(l, approx=True) if approx_reciprocal else 1.0 / l
        inv_full = jnp.concatenate(
            [jnp.broadcast_to(inv_l[:, h:h + 1], (tq, dim_head))
             for h in range(heads)], axis=-1)                    # (TQ, hd)
        out = jnp.dot((acc_scr[...] * inv_full).astype(compute_dtype),
                      w_out_ref[...], preferred_element_type=jnp.float32)
        o_ref[0] = out.astype(o_ref.dtype)


# --------------------------------------------------------------------------
# Wrapper: generation-aware tiling / VMEM budget, two pallas_calls.
# --------------------------------------------------------------------------
def _tpu_generation():
    try:
        kind = jax.devices()[0].device_kind.lower()
    except Exception:
        return 6
    for gen in (7, 6, 5, 4, 3, 2):
        if f"v{gen}" in kind:
            return gen
    return 6


def _vmem_capacity_bytes():
    try:
        return int(pltpu.get_tpu_info().vmem_capacity_bytes)
    except Exception:
        return 64 * 1024 * 1024  # conservative default (v7x: 64 MiB per TC)


def _pick_block(n, candidates):
    for c in candidates:
        if c <= n and n % c == 0:
            return c
    return n


def attention_pallas(x, gamma, w_qkv, mem_k, mem_v, w_out, *, heads, dim_head,
                     block_q=None, block_kv=None, compute_dtype=jnp.bfloat16,
                     use_bf16_exp=None, approx_reciprocal=True,
                     single_buffer_constants=True):
    b, n, dim = x.shape
    hd = heads * dim_head
    num_mem = mem_k.shape[1]
    assert w_qkv.shape == (dim, 3 * hd) and w_out.shape == (hd, dim)
    assert mem_k.shape == (heads, num_mem, dim_head)
    assert mem_v.shape == (heads, num_mem, dim_head)

    gen = _tpu_generation()
    vmem_cap = _vmem_capacity_bytes()

    if use_bf16_exp is None:
        use_bf16_exp = gen >= 6           # v5e and older: no bf16 EUP path
    exp_dtype = (jnp.bfloat16
                 if (use_bf16_exp and compute_dtype == jnp.bfloat16)
                 else jnp.float32)

    # Tile sizes: 512-wide kv tiles only on v6e (128 MiB VMEM, 256-wide MXU);
    # conservative <=256 on v5e (128x128 MXU) and v7x (64 MiB VMEM).
    bq_cands = (256, 128, 64, 32, 16, 8)
    if gen == 6 and vmem_cap >= 100 * (1 << 20):
        bkv_cands = (512, 256, 128, 64, 32, 16, 8)
    else:
        bkv_cands = (256, 128, 64, 32, 16, 8)
    block_q = block_q or _pick_block(n, bq_cands)
    block_kv = block_kv or _pick_block(n, bkv_cands)
    assert n % block_q == 0 and n % block_kv == 0
    block_p = _pick_block(n, (512, 256, 128, 64, 32, 16, 8))  # projection pass

    # Fold the softmax scale into W_q, split the fused QKV weight, cast the
    # matmul operands to the MXU-native dtype (accumulation stays f32).
    scale = dim_head ** -0.5
    w_q = (w_qkv[:, :hd] * scale).astype(compute_dtype)
    w_k = w_qkv[:, hd:2 * hd].astype(compute_dtype)
    w_v = w_qkv[:, 2 * hd:].astype(compute_dtype)
    w_o = w_out.astype(compute_dtype)
    gamma2d = gamma.reshape(1, dim).astype(jnp.float32)

    # Memory-KV tokens -> one lane-dense (m_pad, heads*dim_head) slab, rows
    # padded up to a sublane multiple (padded rows masked inside the kernel).
    m_pad = max(8, ((num_mem + 7) // 8) * 8)

    def _to_slab(t):
        slab = jnp.transpose(t, (1, 0, 2)).reshape(num_mem, hd)
        return jnp.pad(slab, ((0, m_pad - num_mem), (0, 0))).astype(compute_dtype)

    memk_slab = _to_slab(mem_k)
    memv_slab = _to_slab(mem_v)

    # VMEM budget: single-buffered constants + double-buffered tiles + scratch,
    # clamped to 3/4 of physical VMEM (~48 MiB on v7x, ~96 MiB on v5e/v6e).
    csz = jnp.dtype(compute_dtype).itemsize
    xsz = x.dtype.itemsize
    const_bytes = (3 * dim * hd + hd * dim + 2 * m_pad * hd) * csz + dim * 4
    tile_bytes = 2 * (block_p * dim * xsz                 # x tile (pass 1)
                      + 3 * block_p * hd * csz            # q/k/v out tiles
                      + block_q * hd * csz                # q tile (pass 2)
                      + 2 * block_kv * hd * csz           # k, v tiles
                      + block_q * dim * xsz)              # output tile
    scratch_bytes = block_q * (2 * heads + hd) * 4
    est = const_bytes + tile_bytes + scratch_bytes + (4 << 20)
    vmem_limit = int(min(max(est, 16 << 20), vmem_cap * 3 // 4))

    kernel_qkv = partial(_qkv_proj_kernel, scale_dim=dim ** 0.5,
                         compute_dtype=compute_dtype)
    kernel_attn = partial(_attention_kernel, heads=heads, dim_head=dim_head,
                          num_mem=num_mem, compute_dtype=compute_dtype,
                          exp_dtype=exp_dtype,
                          approx_reciprocal=approx_reciprocal)

    def run(single_buf):
        # Constant-index inputs: their index_map never changes, so double
        # buffering them is pure VMEM waste -> single-buffer when supported.
        const_kw = dict(pipeline_mode=pl.Buffered(1)) if single_buf else {}

        q, k, v = pl.pallas_call(
            kernel_qkv,
            out_shape=[jax.ShapeDtypeStruct((b, n, hd), compute_dtype)
                       for _ in range(3)],
            grid=(b, n // block_p),
            in_specs=[
                pl.BlockSpec((1, block_p, dim), lambda bb, i: (bb, i, 0)),
                pl.BlockSpec((1, dim), lambda bb, i: (0, 0), **const_kw),
                pl.BlockSpec((dim, hd), lambda bb, i: (0, 0), **const_kw),
                pl.BlockSpec((dim, hd), lambda bb, i: (0, 0), **const_kw),
                pl.BlockSpec((dim, hd), lambda bb, i: (0, 0), **const_kw),
            ],
            out_specs=[pl.BlockSpec((1, block_p, hd), lambda bb, i: (bb, i, 0))
                       for _ in range(3)],
            compiler_params=pltpu.CompilerParams(
                dimension_semantics=("parallel", "parallel"),
                vmem_limit_bytes=vmem_limit),
        )(x, gamma2d, w_q, w_k, w_v)

        return pl.pallas_call(
            kernel_attn,
            out_shape=jax.ShapeDtypeStruct((b, n, dim), x.dtype),
            grid=(b, n // block_q, n // block_kv),
            in_specs=[
                pl.BlockSpec((1, block_q, hd), lambda bb, qi, ki: (bb, qi, 0)),
                pl.BlockSpec((1, block_kv, hd), lambda bb, qi, ki: (bb, ki, 0)),
                pl.BlockSpec((1, block_kv, hd), lambda bb, qi, ki: (bb, ki, 0)),
                pl.BlockSpec((m_pad, hd), lambda bb, qi, ki: (0, 0), **const_kw),
                pl.BlockSpec((m_pad, hd), lambda bb, qi, ki: (0, 0), **const_kw),
                pl.BlockSpec((hd, dim), lambda bb, qi, ki: (0, 0), **const_kw),
            ],
            out_specs=pl.BlockSpec((1, block_q, dim),
                                   lambda bb, qi, ki: (bb, qi, 0)),
            scratch_shapes=[
                pltpu.VMEM((block_q, heads), jnp.float32),  # running max  m
                pltpu.VMEM((block_q, heads), jnp.float32),  # running sum  l
                pltpu.VMEM((block_q, hd), jnp.float32),     # f32 accumulator
            ],
            compiler_params=pltpu.CompilerParams(
                # batch & q-tile axes shard across TensorCores; on v7x keep
                # b * (n/block_q) >= 2 (ideally even) for full dual-TC use.
                dimension_semantics=("parallel", "parallel", "arbitrary"),
                vmem_limit_bytes=vmem_limit),
        )(q, k, v, memk_slab, memv_slab, w_o)

    if single_buffer_constants:
        try:
            return run(True)
        except Exception:
            # This Pallas build rejected pl.Buffered(1); fall back to default
            # double-buffering of the constant-index inputs.
            pass
    return run(False)


# --------------------------------------------------------------------------
# Plain-JAX f32 reference mirroring the PyTorch module.
# --------------------------------------------------------------------------
def attention_ref(x, gamma, w_qkv, mem_k, mem_v, w_out, *, heads, dim_head):
    b, n, dim = x.shape
    l2 = jnp.sqrt(jnp.sum(x * x, axis=-1, keepdims=True))
    xn = (x / jnp.maximum(l2, 1e-12)) * (dim ** 0.5) * gamma
    qkv = jnp.matmul(xn, w_qkv, precision='highest')
    qkv = qkv.reshape(b, n, 3, heads, dim_head)
    q = qkv[:, :, 0].transpose(0, 2, 1, 3)
    k = qkv[:, :, 1].transpose(0, 2, 1, 3)
    v = qkv[:, :, 2].transpose(0, 2, 1, 3)
    mk = jnp.broadcast_to(mem_k, (b,) + mem_k.shape)
    mv = jnp.broadcast_to(mem_v, (b,) + mem_v.shape)
    k = jnp.concatenate([mk, k], axis=2)
    v = jnp.concatenate([mv, v], axis=2)
    sim = jnp.einsum('bhqd,bhkd->bhqk', q, k,
                     precision='highest') * (dim_head ** -0.5)
    p = jax.nn.softmax(sim, axis=-1)
    out = jnp.einsum('bhqk,bhkd->bhqd', p, v, precision='highest')
    out = out.transpose(0, 2, 1, 3).reshape(b, n, heads * dim_head)
    return jnp.matmul(out, w_out, precision='highest')


def _run_case(key, batch, seq, dim, heads, dim_head, num_mem, **pallas_kwargs):
    dim_inner = heads * dim_head
    kx, kg, kqkv, kmem, kout = jax.random.split(key, 5)
    x = jax.random.normal(kx, (batch, seq, dim), jnp.float32)
    gamma = 1.0 + 0.1 * jax.random.normal(kg, (dim,), jnp.float32)
    w_qkv = jax.random.normal(kqkv, (dim, 3 * dim_inner), jnp.float32) * 0.08
    mem_kv = jax.random.normal(kmem, (2, heads, num_mem, dim_head), jnp.float32)
    mem_k, mem_v = mem_kv[0], mem_kv[1]
    w_out = jax.random.normal(kout, (dim_inner, dim), jnp.float32) * 0.08

    out = attention_pallas(x, gamma, w_qkv, mem_k, mem_v, w_out,
                           heads=heads, dim_head=dim_head, **pallas_kwargs)
    out = jax.block_until_ready(out)
    ref = attention_ref(x, gamma, w_qkv, mem_k, mem_v, w_out,
                        heads=heads, dim_head=dim_head)
    assert out.shape == (batch, seq, dim)
    max_err = float(jnp.max(jnp.abs(out - ref)))
    # bf16 matmul operands + bf16 exp (v6e/v7x) + approx reciprocal.
    assert jnp.allclose(out, ref, atol=4e-2, rtol=4e-2), max_err
    return max_err


if __name__ == "__main__":
    key = jax.random.PRNGKey(0)
    k1, k2 = jax.random.split(key)

    # Small config consistent with the module defaults:
    # dim=32, heads=4, dim_head=8, num_memory_kv=4, batch=2, seq=8.
    _run_case(k1, batch=2, seq=8, dim=32, heads=4, dim_head=8, num_mem=4)

    # Multi-tile online-softmax path (grid over q and kv tiles) with a
    # non-multiple-of-8 memory-KV count (exercises the padded/masked slab).
    _run_case(k2, batch=1, seq=256, dim=32, heads=2, dim_head=8, num_mem=5,
              block_q=128, block_kv=128)

    print("KERNEL_OK")
</pallas_src>

<mosaic_0001>
module attributes {stable_mosaic.version = 11 : i64} {
  func.func @_qkv_proj_kernel(%arg0: i32, %arg1: i32, %arg2: memref<1x8x32xf32, #tpu.memory_space<vmem>>, %arg3: memref<1x32xf32, #tpu.memory_space<vmem>>, %arg4: memref<32x32xbf16, #tpu.memory_space<vmem>>, %arg5: memref<32x32xbf16, #tpu.memory_space<vmem>>, %arg6: memref<32x32xbf16, #tpu.memory_space<vmem>>, %arg7: memref<1x8x32xbf16, #tpu.memory_space<vmem>>, %arg8: memref<1x8x32xbf16, #tpu.memory_space<vmem>>, %arg9: memref<1x8x32xbf16, #tpu.memory_space<vmem>>) attributes {dimension_semantics = [#tpu.dimension_semantics<parallel>, #tpu.dimension_semantics<parallel>], iteration_bounds = array<i64: 2, 1>, scalar_prefetch = 0 : i64, scratch_operands = 0 : i64, tpu.core_type = #tpu.core_type<tc>, window_params = [{transform_indices = @transform_0, window_bounds = array<i64: 1, 8, 32>}, {pipeline_mode = #tpu.pipeline_mode<synchronous>, transform_indices = @transform_1, window_bounds = array<i64: 1, 32>}, {pipeline_mode = #tpu.pipeline_mode<synchronous>, transform_indices = @transform_2, window_bounds = array<i64: 32, 32>}, {pipeline_mode = #tpu.pipeline_mode<synchronous>, transform_indices = @transform_3, window_bounds = array<i64: 32, 32>}, {pipeline_mode = #tpu.pipeline_mode<synchronous>, transform_indices = @transform_4, window_bounds = array<i64: 32, 32>}, {transform_indices = @transform_5, window_bounds = array<i64: 1, 8, 32>}, {transform_indices = @transform_6, window_bounds = array<i64: 1, 8, 32>}, {transform_indices = @transform_7, window_bounds = array<i64: 1, 8, 32>}]} {
    %c0 = arith.constant 0 : index
    %c0_0 = arith.constant 0 : index
    %c0_1 = arith.constant 0 : index
    %0 = vector.load %arg2[%c0, %c0_0, %c0_1] : memref<1x8x32xf32, #tpu.memory_space<vmem>>, vector<1x8x32xf32>
    %1 = vector.shape_cast %0 : vector<1x8x32xf32> to vector<8x32xf32>
    %2 = arith.mulf %1, %1 : vector<8x32xf32>
    %cst = arith.constant dense<0.000000e+00> : vector<8xf32>
    %3 = vector.multi_reduction <add>, %2, %cst [1] : vector<8x32xf32> to vector<8xf32>
    %4 = vector.shape_cast %3 : vector<8xf32> to vector<8x1xf32>
    %cst_2 = arith.constant 1.000000e-24 : f32
    %5 = vector.broadcast %cst_2 : f32 to vector<8x1xf32>
    %6 = arith.maximumf %4, %5 : vector<8x1xf32>
    %7 = math.rsqrt %6 : vector<8x1xf32>
    %8 = vector.broadcast %7 : vector<8x1xf32> to vector<8x32xf32>
    %9 = arith.mulf %1, %8 : vector<8x32xf32>
    %cst_3 = arith.constant 5.65685415 : f32
    %10 = vector.broadcast %cst_3 : f32 to vector<8x32xf32>
    %11 = arith.mulf %9, %10 : vector<8x32xf32>
    %c0_4 = arith.constant 0 : index
    %c0_5 = arith.constant 0 : index
    %12 = vector.load %arg3[%c0_4, %c0_5] : memref<1x32xf32, #tpu.memory_space<vmem>>, vector<1x32xf32>
    %13 = vector.broadcast %12 : vector<1x32xf32> to vector<8x32xf32>
    %14 = arith.mulf %11, %13 : vector<8x32xf32>
    %15 = arith.truncf %14 : vector<8x32xf32> to vector<8x32xbf16>
    %c0_6 = arith.constant 0 : index
    %c0_7 = arith.constant 0 : index
    %16 = vector.load %arg4[%c0_6, %c0_7] : memref<32x32xbf16, #tpu.memory_space<vmem>>, vector<32x32xbf16>
    %cst_8 = arith.constant dense<0.000000e+00> : vector<8x32xf32>
    %17 = tpu.matmul %15, %16, %cst_8 {dimension_numbers = #tpu.dot_dimension_numbers<[1], [0], [0], [1], [0, 0, 1, 1], [], []>} : vector<8x32xbf16>, vector<32x32xbf16>, vector<8x32xf32> -> vector<8x32xf32>
    %18 = arith.truncf %17 : vector<8x32xf32> to vector<8x32xbf16>
    %c0_9 = arith.constant 0 : index
    %c0_10 = arith.constant 0 : index
    %c0_11 = arith.constant 0 : index
    %19 = vector.load %arg7[%c0_9, %c0_10, %c0_11] : memref<1x8x32xbf16, #tpu.memory_space<vmem>>, vector<1x8x32xbf16>
    %20 = vector.shape_cast %19 : vector<1x8x32xbf16> to vector<8x32xbf16>
    %21 = vector.shape_cast %18 : vector<8x32xbf16> to vector<1x8x32xbf16>
    tpu.vector_store %arg7[%c0_9, %c0_10, %c0_11], %21 {strides = array<i32>} : memref<1x8x32xbf16, #tpu.memory_space<vmem>>, vector<1x8x32xbf16>,
    %c0_12 = arith.constant 0 : index
    %c0_13 = arith.constant 0 : index
    %22 = vector.load %arg5[%c0_12, %c0_13] : memref<32x32xbf16, #tpu.memory_space<vmem>>, vector<32x32xbf16>
    %cst_14 = arith.constant dense<0.000000e+00> : vector<8x32xf32>
    %23 = tpu.matmul %15, %22, %cst_14 {dimension_numbers = #tpu.dot_dimension_numbers<[1], [0], [0], [1], [0, 0, 1, 1], [], []>} : vector<8x32xbf16>, vector<32x32xbf16>, vector<8x32xf32> -> vector<8x32xf32>
    %24 = arith.truncf %23 : vector<8x32xf32> to vector<8x32xbf16>
    %c0_15 = arith.constant 0 : index
    %c0_16 = arith.constant 0 : index
    %c0_17 = arith.constant 0 : index
    %25 = vector.load %arg8[%c0_15, %c0_16, %c0_17] : memref<1x8x32xbf16, #tpu.memory_space<vmem>>, vector<1x8x32xbf16>
    %26 = vector.shape_cast %25 : vector<1x8x32xbf16> to vector<8x32xbf16>
    %27 = vector.shape_cast %24 : vector<8x32xbf16> to vector<1x8x32xbf16>
    tpu.vector_store %arg8[%c0_15, %c0_16, %c0_17], %27 {strides = array<i32>} : memref<1x8x32xbf16, #tpu.memory_space<vmem>>, vector<1x8x32xbf16>,
    %c0_18 = arith.constant 0 : index
    %c0_19 = arith.constant 0 : index
    %28 = vector.load %arg6[%c0_18, %c0_19] : memref<32x32xbf16, #tpu.memory_space<vmem>>, vector<32x32xbf16>
    %cst_20 = arith.constant dense<0.000000e+00> : vector<8x32xf32>
    %29 = tpu.matmul %15, %28, %cst_20 {dimension_numbers = #tpu.dot_dimension_numbers<[1], [0], [0], [1], [0, 0, 1, 1], [], []>} : vector<8x32xbf16>, vector<32x32xbf16>, vector<8x32xf32> -> vector<8x32xf32>
    %30 = arith.truncf %29 : vector<8x32xf32> to vector<8x32xbf16>
    %c0_21 = arith.constant 0 : index
    %c0_22 = arith.constant 0 : index
    %c0_23 = arith.constant 0 : index
    %31 = vector.load %arg9[%c0_21, %c0_22, %c0_23] : memref<1x8x32xbf16, #tpu.memory_space<vmem>>, vector<1x8x32xbf16>
    %32 = vector.shape_cast %31 : vector<1x8x32xbf16> to vector<8x32xbf16>
    %33 = vector.shape_cast %30 : vector<8x32xbf16> to vector<1x8x32xbf16>
    tpu.vector_store %arg9[%c0_21, %c0_22, %c0_23], %33 {strides = array<i32>} : memref<1x8x32xbf16, #tpu.memory_space<vmem>>, vector<1x8x32xbf16>,
    return
  }
  func.func @transform_0(%arg0: i32, %arg1: i32) -> (i32, i32, i32) {
    %c0_i32 = arith.constant 0 : i32
    %c0_i32_0 = arith.constant 0 : i32
    return %arg0, %arg1, %c0_i32 : i32, i32, i32
  }
  func.func @transform_1(%arg0: i32, %arg1: i32) -> (i32, i32) {
    %c0_i32 = arith.constant 0 : i32
    %c0_i32_0 = arith.constant 0 : i32
    %c0_i32_1 = arith.constant 0 : i32
    return %c0_i32, %c0_i32_0 : i32, i32
  }
  func.func @transform_2(%arg0: i32, %arg1: i32) -> (i32, i32) {
    %c0_i32 = arith.constant 0 : i32
    %c0_i32_0 = arith.constant 0 : i32
    %c0_i32_1 = arith.constant 0 : i32
    return %c0_i32, %c0_i32_0 : i32, i32
  }
  func.func @transform_3(%arg0: i32, %arg1: i32) -> (i32, i32) {
    %c0_i32 = arith.constant 0 : i32
    %c0_i32_0 = arith.constant 0 : i32
    %c0_i32_1 = arith.constant 0 : i32
    return %c0_i32, %c0_i32_0 : i32, i32
  }
  func.func @transform_4(%arg0: i32, %arg1: i32) -> (i32, i32) {
    %c0_i32 = arith.constant 0 : i32
    %c0_i32_0 = arith.constant 0 : i32
    %c0_i32_1 = arith.constant 0 : i32
    return %c0_i32, %c0_i32_0 : i32, i32
  }
  func.func @transform_5(%arg0: i32, %arg1: i32) -> (i32, i32, i32) {
    %c0_i32 = arith.constant 0 : i32
    %c0_i32_0 = arith.constant 0 : i32
    return %arg0, %arg1, %c0_i32 : i32, i32, i32
  }
  func.func @transform_6(%arg0: i32, %arg1: i32) -> (i32, i32, i32) {
    %c0_i32 = arith.constant 0 : i32
    %c0_i32_0 = arith.constant 0 : i32
    return %arg0, %arg1, %c0_i32 : i32, i32, i32
  }
  func.func @transform_7(%arg0: i32, %arg1: i32) -> (i32, i32, i32) {
    %c0_i32 = arith.constant 0 : i32
    %c0_i32_0 = arith.constant 0 : i32
    return %arg0, %arg1, %c0_i32 : i32, i32, i32
  }
}

module attributes {stable_mosaic.version = 11 : i64} {
  func.func @_qkv_proj_kernel(%arg0: i32, %arg1: i32, %arg2: memref<1x8x32xf32, #tpu.memory_space<vmem>>, %arg3: memref<1x32xf32, #tpu.memory_space<vmem>>, %arg4: memref<32x32xbf16, #tpu.memory_space<vmem>>, %arg5: memref<32x32xbf16, #tpu.memory_space<vmem>>, %arg6: memref<32x32xbf16, #tpu.memory_space<vmem>>, %arg7: memref<1x8x32xbf16, #tpu.memory_space<vmem>>, %arg8: memref<1x8x32xbf16, #tpu.memory_space<vmem>>, %arg9: memref<1x8x32xbf16, #tpu.memory_space<vmem>>) attributes {dimension_semantics = [#tpu.dimension_semantics<parallel>, #tpu.dimension_semantics<parallel>], iteration_bounds = array<i64: 2, 1>, scalar_prefetch = 0 : i64, scratch_operands = 0 : i64, tpu.core_type = #tpu.core_type<tc>, window_params = [{transform_indices = @transform_0, window_bounds = array<i64: 1, 8, 32>}, {pipeline_mode = #tpu.pipeline_mode<synchronous>, transform_indices = @transform_1, window_bounds = array<i64: 1, 32>}, {pipeline_mode = #tpu.pipeline_mode<synchronous>, transform_indices = @transform_2, window_bounds = array<i64: 32, 32>}, {pipeline_mode = #tpu.pipeline_mode<synchronous>, transform_indices = @transform_3, window_bounds = array<i64: 32, 32>}, {pipeline_mode = #tpu.pipeline_mode<synchronous>, transform_indices = @transform_4, window_bounds = array<i64: 32, 32>}, {transform_indices = @transform_5, window_bounds = array<i64: 1, 8, 32>}, {transform_indices = @transform_6, window_bounds = array<i64: 1, 8, 32>}, {transform_indices = @transform_7, window_bounds = array<i64: 1, 8, 32>}]} {
    %c0 = arith.constant 0 : index
    %c0_0 = arith.constant 0 : index
    %c0_1 = arith.constant 0 : index
    %0 = vector.load %arg2[%c0, %c0_0, %c0_1] : memref<1x8x32xf32, #tpu.memory_space<vmem>>, vector<1x8x32xf32>
    %1 = vector.shape_cast %0 : vector<1x8x32xf32> to vector<8x32xf32>
    %2 = arith.mulf %1, %1 : vector<8x32xf32>
    %cst = arith.constant dense<0.000000e+00> : vector<8xf32>
    %3 = vector.multi_reduction <add>, %2, %cst [1] : vector<8x32xf32> to vector<8xf32>
    %4 = vector.shape_cast %3 : vector<8xf32> to vector<8x1xf32>
    %cst_2 = arith.constant 1.000000e-24 : f32
    %5 = vector.broadcast %cst_2 : f32 to vector<8x1xf32>
    %6 = arith.maximumf %4, %5 : vector<8x1xf32>
    %7 = math.rsqrt %6 : vector<8x1xf32>
    %8 = vector.broadcast %7 : vector<8x1xf32> to vector<8x32xf32>
    %9 = arith.mulf %1, %8 : vector<8x32xf32>
    %cst_3 = arith.constant 5.65685415 : f32
    %10 = vector.broadcast %cst_3 : f32 to vector<8x32xf32>
    %11 = arith.mulf %9, %10 : vector<8x32xf32>
    %c0_4 = arith.constant 0 : index
    %c0_5 = arith.constant 0 : index
    %12 = vector.load %arg3[%c0_4, %c0_5] : memref<1x32xf32, #tpu.memory_space<vmem>>, vector<1x32xf32>
    %13 = vector.broadcast %12 : vector<1x32xf32> to vector<8x32xf32>
    %14 = arith.mulf %11, %13 : vector<8x32xf32>
    %15 = arith.truncf %14 : vector<8x32xf32> to vector<8x32xbf16>
    %c0_6 = arith.constant 0 : index
    %c0_7 = arith.constant 0 : index
    %16 = vector.load %arg4[%c0_6, %c0_7] : memref<32x32xbf16, #tpu.memory_space<vmem>>, vector<32x32xbf16>
    %cst_8 = arith.constant dense<0.000000e+00> : vector<8x32xf32>
    %17 = tpu.matmul %15, %16, %cst_8 {dimension_numbers = #tpu.dot_dimension_numbers<[1], [0], [0], [1], [0, 0, 1, 1], [], []>} : vector<8x32xbf16>, vector<32x32xbf16>, vector<8x32xf32> -> vector<8x32xf32>
    %18 = arith.truncf %17 : vector<8x32xf32> to vector<8x32xbf16>
    %c0_9 = arith.constant 0 : index
    %c0_10 = arith.constant 0 : index
    %c0_11 = arith.constant 0 : index
    %19 = vector.load %arg7[%c0_9, %c0_10, %c0_11] : memref<1x8x32xbf16, #tpu.memory_space<vmem>>, vector<1x8x32xbf16>
    %20 = vector.shape_cast %19 : vector<1x8x32xbf16> to vector<8x32xbf16>
    %21 = vector.shape_cast %18 : vector<8x32xbf16> to vector<1x8x32xbf16>
    tpu.vector_store %arg7[%c0_9, %c0_10, %c0_11], %21 {strides = array<i32>} : memref<1x8x32xbf16, #tpu.memory_space<vmem>>, vector<1x8x32xbf16>,
    %c0_12 = arith.constant 0 : index
    %c0_13 = arith.constant 0 : index
    %22 = vector.load %arg5[%c0_12, %c0_13] : memref<32x32xbf16, #tpu.memory_space<vmem>>, vector<32x32xbf16>
    %cst_14 = arith.constant dense<0.000000e+00> : vector<8x32xf32>
    %23 = tpu.matmul %15, %22, %cst_14 {dimension_numbers = #tpu.dot_dimension_numbers<[1], [0], [0], [1], [0, 0, 1, 1], [], []>} : vector<8x32xbf16>, vector<32x32xbf16>, vector<8x32xf32> -> vector<8x32xf32>
    %24 = arith.truncf %23 : vector<8x32xf32> to vector<8x32xbf16>
    %c0_15 = arith.constant 0 : index
    %c0_16 = arith.constant 0 : index
    %c0_17 = arith.constant 0 : index
    %25 = vector.load %arg8[%c0_15, %c0_16, %c0_17] : memref<1x8x32xbf16, #tpu.memory_space<vmem>>, vector<1x8x32xbf16>
    %26 = vector.shape_cast %25 : vector<1x8x32xbf16> to vector<8x32xbf16>
    %27 = vector.shape_cast %24 : vector<8x32xbf16> to vector<1x8x32xbf16>
    tpu.vector_store %arg8[%c0_15, %c0_16, %c0_17], %27 {strides = array<i32>} : memref<1x8x32xbf16, #tpu.memory_space<vmem>>, vector<1x8x32xbf16>,
    %c0_18 = arith.constant 0 : index
    %c0_19 = arith.constant 0 : index
    %28 = vector.load %arg6[%c0_18, %c0_19] : memref<32x32xbf16, #tpu.memory_space<vmem>>, vector<32x32xbf16>
    %cst_20 = arith.constant dense<0.000000e+00> : vector<8x32xf32>
    %29 = tpu.matmul %15, %28, %cst_20 {dimension_numbers = #tpu.dot_dimension_numbers<[1], [0], [0], [1], [0, 0, 1, 1], [], []>} : vector<8x32xbf16>, vector<32x32xbf16>, vector<8x32xf32> -> vector<8x32xf32>
    %30 = arith.truncf %29 : vector<8x32xf32> to vector<8x32xbf16>
    %c0_21 = arith.constant 0 : index
    %c0_22 = arith.constant 0 : index
    %c0_23 = arith.constant 0 : index
    %31 = vector.load %arg9[%c0_21, %c0_22, %c0_23] : memref<1x8x32xbf16, #tpu.memory_space<vmem>>, vector<1x8x32xbf16>
    %32 = vector.shape_cast %31 : vector<1x8x32xbf16> to vector<8x32xbf16>
    %33 = vector.shape_cast %30 : vector<8x32xbf16> to vector<1x8x32xbf16>
    tpu.vector_store %arg9[%c0_21, %c0_22, %c0_23], %33 {strides = array<i32>} : memref<1x8x32xbf16, #tpu.memory_space<vmem>>, vector<1x8x32xbf16>,
    return
  }
  func.func @transform_0(%arg0: i32, %arg1: i32) -> (i32, i32, i32) {
    %c0_i32 = arith.constant 0 : i32
    %c0_i32_0 = arith.constant 0 : i32
    return %arg0, %arg1, %c0_i32 : i32, i32, i32
  }
  func.func @transform_1(%arg0: i32, %arg1: i32) -> (i32, i32) {
    %c0_i32 = arith.constant 0 : i32
    %c0_i32_0 = arith.constant 0 : i32
    %c0_i32_1 = arith.constant 0 : i32
    return %c0_i32, %c0_i32_0 : i32, i32
  }
  func.func @transform_2(%arg0: i32, %arg1: i32) -> (i32, i32) {
    %c0_i32 = arith.constant 0 : i32
    %c0_i32_0 = arith.constant 0 : i32
    %c0_i32_1 = arith.constant 0 : i32
    return %c0_i32, %c0_i32_0 : i32, i32
  }
  func.func @transform_3(%arg0: i32, %arg1: i32) -> (i32, i32) {
    %c0_i32 = arith.constant 0 : i32
    %c0_i32_0 = arith.constant 0 : i32
    %c0_i32_1 = arith.constant 0 : i32
    return %c0_i32, %c0_i32_0 : i32, i32
  }
  func.func @transform_4(%arg0: i32, %arg1: i32) -> (i32, i32) {
    %c0_i32 = arith.constant 0 : i32
    %c0_i32_0 = arith.constant 0 : i32
    %c0_i32_1 = arith.constant 0 : i32
    return %c0_i32, %c0_i32_0 : i32, i32
  }
  func.func @transform_5(%arg0: i32, %arg1: i32) -> (i32, i32, i32) {
    %c0_i32 = arith.constant 0 : i32
    %c0_i32_0 = arith.constant 0 : i32
    return %arg0, %arg1, %c0_i32 : i32, i32, i32
  }
  func.func @transform_6(%arg0: i32, %arg1: i32) -> (i32, i32, i32) {
    %c0_i32 = arith.constant 0 : i32
    %c0_i32_0 = arith.constant 0 : i32
    return %arg0, %arg1, %c0_i32 : i32, i32, i32
  }
  func.func @transform_7(%arg0: i32, %arg1: i32) -> (i32, i32, i32) {
    %c0_i32 = arith.constant 0 : i32
    %c0_i32_0 = arith.constant 0 : i32
    return %arg0, %arg1, %c0_i32 : i32, i32, i32
  }
}

</mosaic_0001>

<llo_original>
// kernel: tpu_custom_call.1
$region0: #{tpu_custom_call.1}
  #allocation0 [shape = 'u32[]', space=smem, size = 0x4, offset = 0x4, fixed_abs, tag = 'smem constant byte address 0x4 - core index']
  #allocation1 [shape = 'u32[144,128]{1,0:T(1,128)}', space=vmem, size = 0x12000, scoped, tag = 'internal scratch']
  %s0 = inlined_call_operand.hbm [shape: f32[2,8,32], index: 0, kind: input, shape index: {}]
  %s1 = inlined_call_operand.vmem [shape: f32[1,32], index: 1, kind: input, shape index: {}]
  %s2 = inlined_call_operand.hbm [shape: bf16[32,32], index: 2, kind: input, shape index: {}]
  %s3 = inlined_call_operand.hbm [shape: bf16[32,32], index: 3, kind: input, shape index: {}]
  %s4 = inlined_call_operand.hbm [shape: bf16[32,32], index: 4, kind: input, shape index: {}]
  %s5 = inlined_call_operand.hbm [shape: bf16[2,8,32], index: 5, kind: output, shape index: {0}]
  %s6 = inlined_call_operand.hbm [shape: bf16[2,8,32], index: 6, kind: output, shape index: {1}]
  %s7 = inlined_call_operand.hbm [shape: bf16[2,8,32], index: 7, kind: output, shape index: {2}]
  %8 = xla_tuple %s5, %s6, %s7
  %s9 = sld [smem:[#allocation0]]
  $region85: #{tpu_custom_call.1} parent=0
    _
  %s11 = ssub.s32 1, %s9
  %s12 = scalar_select 0, %s11, %s9
  $region1: #{tpu_custom_call.1} parent=0
    #allocation2 [shape = 'u8[8192]{0}', space=vmem, size = 0x2000, scoped, tag = 'input window, operand 0']
    #allocation3 [shape = 's32[2]{0}', space=sflag, size = 0x8, scoped, tag = 'scoped memory for tpu_custom_call.1']
    #allocation4 [shape = 's32[2]{0}', space=sflag, size = 0x8, scoped, tag = 'scoped memory for tpu_custom_call.1']
    #allocation5 [shape = 'u8[8192]{0}', space=vmem, size = 0x2000, scoped, tag = 'input window, operand 2, single buffered']
    #allocation6 [shape = 's32[1]{0}', space=sflag, size = 0x4, scoped, tag = 'scoped memory for tpu_custom_call.1']
    #allocation7 [shape = 'u8[8192]{0}', space=vmem, size = 0x2000, scoped, tag = 'input window, operand 3, single buffered']
    #allocation8 [shape = 'u8[8192]{0}', space=vmem, size = 0x2000, scoped, tag = 'input window, operand 4, single buffered']
    #allocation9 [shape = 's32[1]{0}', space=sflag, size = 0x4, scoped, tag = 'scoped memory for tpu_custom_call.1']
    #allocation10 [shape = 'u8[4096]{0}', space=vmem, size = 0x1000, scoped, tag = 'output window, operand 0']
    #allocation11 [shape = 'u8[4096]{0}', space=vmem, size = 0x1000, scoped, tag = 'output window, operand 1']
    #allocation12 [shape = 's32[2]{0}', space=sflag, size = 0x8, scoped, tag = 'scoped memory for tpu_custom_call.1']
    #allocation13 [shape = 'u8[4096]{0}', space=vmem, size = 0x1000, scoped, tag = 'output window, operand 2']
    %13 = vsyncpa [#allocation3], 0
    %s14 = scalar_lea.sflag [#allocation3], 1
    %15 = vsyncpa %s14, 0
    %16 = vsyncpa [#allocation6], 0
    %17 = vsyncpa [#allocation9], 0
    %18 = vsyncpa [#allocation4], 0
    %s19 = scalar_lea.sflag [#allocation4], 1
    %20 = vsyncpa %s19, 0
    %21 = vsyncpa [#allocation12], 0
    %s22 = scalar_lea.sflag [#allocation12], 1
    %23 = vsyncpa %s22, 0
    loop: start=0, step=1, limit=4
    $region2: #{tpu_custom_call.1} parent=1 // loop_pre_header
      _
    $region3: #{tpu_custom_call.1} parent=1 // loop_header
      %s25 = sphi 0, %s29
      %p26 = scmp.ge.s32.totalorder %s25, 4
      %s32 = sphi 0, %s44
      %s33 = sphi 0, %s40
      %s34 = sphi 0, %s32
      %s35 = sphi 0, %s33
      %s36 = sphi 0, %s34
      %s37 = sphi 0, %s35
      %s49 = sphi 0, %s51
      %s52 = sphi 0, %s49
      %s53 = sphi 0, %s52
      %s69 = sphi 0, %s53
      %s73 = sphi 0, %s73
      %s75 = sphi 0, %s73
      %s76 = sphi 0, %s75
      %s90 = sphi 0, %s76
      %s94 = sphi 0, %s94
      %s96 = sphi 0, %s94
      %s97 = sphi 0, %s96
      %s111 = sphi 0, %s97
      %s115 = sphi 0, %s115
      %s117 = sphi 0, %s115
      %s118 = sphi 0, %s117
      %s132 = sphi 0, %s118
      %s136 = sphi 0, %s136
      %s138 = sphi 0, %s136
      %s139 = sphi 0, %s138
      %s153 = sphi 0, %s139
      %s161 = sphi 0, %s163
      %s164 = sphi 0, %s161
      %s165 = sphi 0, %s164
      %s181 = sphi 0, %s165
      %s189 = sphi 0, %s191
      %s192 = sphi 0, %s189
      %s193 = sphi 0, %s192
      %s209 = sphi 0, %s193
      %s217 = sphi 0, %s219
      %s220 = sphi 0, %s217
      %s221 = sphi 0, %s220
      %s237 = sphi 0, %s221
    $region4: #{tpu_custom_call.1} parent=1 // loop_header_branch
      %28 = sbr.rel (%p26) target = $region8
    $region5: #{tpu_custom_call.1} parent=1 // loop_body
      %s30 = ssub.s32 %s25, 1
      %s31 = ssub.s32 %s25, 2
      %s38 = sadd.s32 1, %s33
      %p39 = scmp.ge.s32.totalorder %s38, 1
      %s40 = scalar_select %p39, 0, %s38
      %s41 = sadd.s32 1, %s32
      %s42 = scalar_select %p39, %s41, %s32
      %p43 = scmp.ge.s32.totalorder %s42, 2
      %s44 = scalar_select %p43, 0, %s42
      %s45 = ssub.s32 %s32, %s44
      %s46 = ssub.s32 %s33, %s40
      %s47 = sor.u32 %s45, %s46
      %p48 = scmp.eq.s32.totalorder %s47, 0
      %s50 = sadd.s32 %s49, 1
      %s51 = scalar_select %p48, %s49, %s50
      %p54 = pneg %p48
      %p55 = scmp.eq.s32.totalorder %s25, 1
      %p56 = por %p54, %p55
      %p57 = scmp.ne.s32.totalorder %s49, %s52
      %p58 = scmp.eq.s32.totalorder %s25, 0
      %p59 = por %p57, %p58
      %p60 = scmp.ne.s32.totalorder %s49, %s52
      %p61 = scmp.eq.s32.totalorder %s30, 1
      %p62 = por %p60, %p61
      %p63 = scmp.ne.s32.totalorder %s52, %s53
      %p64 = scmp.eq.s32.totalorder %s30, 0
      %p65 = por %p63, %p64
      %p66 = scmp.ne.s32.totalorder %s52, %s53
      %p67 = scmp.eq.s32.totalorder %s31, 1
      %p68 = por %p66, %p67
      %p70 = scmp.ne.s32.totalorder %s53, %s69
      %p71 = scmp.eq.s32.totalorder %s31, 0
      %p72 = por %p70, %p71
      %s74 = sadd.s32 %s73, 1
      %p77 = scmp.eq.s32.totalorder %s25, 1
      %p78 = scmp.ne.s32.totalorder %s73, %s75
      %p79 = scmp.eq.s32.totalorder %s25, 0
      %p80 = por %p78, %p79
      %p81 = scmp.ne.s32.totalorder %s73, %s75
      %p82 = scmp.eq.s32.totalorder %s30, 1
      %p83 = por %p81, %p82
      %p84 = scmp.ne.s32.totalorder %s75, %s76
      %p85 = scmp.eq.s32.totalorder %s30, 0
      %p86 = por %p84, %p85
      %p87 = scmp.ne.s32.totalorder %s75, %s76
      %p88 = scmp.eq.s32.totalorder %s31, 1
      %p89 = por %p87, %p88
      %p91 = scmp.ne.s32.totalorder %s76, %s90
      %p92 = scmp.eq.s32.totalorder %s31, 0
      %p93 = por %p91, %p92
      %s95 = sadd.s32 %s94, 1
      %p98 = scmp.eq.s32.totalorder %s25, 1
      %p99 = scmp.ne.s32.totalorder %s94, %s96
      %p100 = scmp.eq.s32.totalorder %s25, 0
      %p101 = por %p99, %p100
      %p102 = scmp.ne.s32.totalorder %s94, %s96
      %p103 = scmp.eq.s32.totalorder %s30, 1
      %p104 = por %p102, %p103
      %p105 = scmp.ne.s32.totalorder %s96, %s97
      %p106 = scmp.eq.s32.totalorder %s30, 0
      %p107 = por %p105, %p106
      %p108 = scmp.ne.s32.totalorder %s96, %s97
      %p109 = scmp.eq.s32.totalorder %s31, 1
      %p110 = por %p108, %p109
      %p112 = scmp.ne.s32.totalorder %s97, %s111
      %p113 = scmp.eq.s32.totalorder %s31, 0
      %p114 = por %p112, %p113
      %s116 = sadd.s32 %s115, 1
      %p119 = scmp.eq.s32.totalorder %s25, 1
      %p120 = scmp.ne.s32.totalorder %s115, %s117
      %p121 = scmp.eq.s32.totalorder %s25, 0
      %p122 = por %p120, %p121
      %p123 = scmp.ne.s32.totalorder %s115, %s117
      %p124 = scmp.eq.s32.totalorder %s30, 1
      %p125 = por %p123, %p124
      %p126 = scmp.ne.s32.totalorder %s117, %s118
      %p127 = scmp.eq.s32.totalorder %s30, 0
      %p128 = por %p126, %p127
      %p129 = scmp.ne.s32.totalorder %s117, %s118
      %p130 = scmp.eq.s32.totalorder %s31, 1
      %p131 = por %p129, %p130
      %p133 = scmp.ne.s32.totalorder %s118, %s132
      %p134 = scmp.eq.s32.totalorder %s31, 0
      %p135 = por %p133, %p134
      %s137 = sadd.s32 %s136, 1
      %p140 = scmp.eq.s32.totalorder %s25, 1
      %p141 = scmp.ne.s32.totalorder %s136, %s138
      %p142 = scmp.eq.s32.totalorder %s25, 0
      %p143 = por %p141, %p142
      %p144 = scmp.ne.s32.totalorder %s136, %s138
      %p145 = scmp.eq.s32.totalorder %s30, 1
      %p146 = por %p144, %p145
      %p147 = scmp.ne.s32.totalorder %s138, %s139
      %p148 = scmp.eq.s32.totalorder %s30, 0
      %p149 = por %p147, %p148
      %p150 = scmp.ne.s32.totalorder %s138, %s139
      %p151 = scmp.eq.s32.totalorder %s31, 1
      %p152 = por %p150, %p151
      %p154 = scmp.ne.s32.totalorder %s139, %s153
      %p155 = scmp.eq.s32.totalorder %s31, 0
      %p156 = por %p154, %p155
      %s157 = ssub.s32 %s32, %s44
      %s158 = ssub.s32 %s33, %s40
      %s159 = sor.u32 %s157, %s158
      %p160 = scmp.eq.s32.totalorder %s159, 0
      %s162 = sadd.s32 %s161, 1
      %s163 = scalar_select %p160, %s161, %s162
      %p166 = pneg %p160
      %p167 = scmp.eq.s32.totalorder %s25, 1
      %p168 = por %p166, %p167
      %p169 = scmp.ne.s32.totalorder %s161, %s164
      %p170 = scmp.eq.s32.totalorder %s25, 0
      %p171 = por %p169, %p170
      %p172 = scmp.ne.s32.totalorder %s161, %s164
      %p173 = scmp.eq.s32.totalorder %s30, 1
      %p174 = por %p172, %p173
      %p175 = scmp.ne.s32.totalorder %s164, %s165
      %p176 = scmp.eq.s32.totalorder %s30, 0
      %p177 = por %p175, %p176
      %p178 = scmp.ne.s32.totalorder %s164, %s165
      %p179 = scmp.eq.s32.totalorder %s31, 1
      %p180 = por %p178, %p179
      %p182 = scmp.ne.s32.totalorder %s165, %s181
      %p183 = scmp.eq.s32.totalorder %s31, 0
      %p184 = por %p182, %p183
      %s185 = ssub.s32 %s32, %s44
      %s186 = ssub.s32 %s33, %s40
      %s187 = sor.u32 %s185, %s186
      %p188 = scmp.eq.s32.totalorder %s187, 0
      %s190 = sadd.s32 %s189, 1
      %s191 = scalar_select %p188, %s189, %s190
      %p194 = pneg %p188
      %p195 = scmp.eq.s32.totalorder %s25, 1
      %p196 = por %p194, %p195
      %p197 = scmp.ne.s32.totalorder %s189, %s192
      %p198 = scmp.eq.s32.totalorder %s25, 0
      %p199 = por %p197, %p198
      %p200 = scmp.ne.s32.totalorder %s189, %s192
      %p201 = scmp.eq.s32.totalorder %s30, 1
      %p202 = por %p200, %p201
      %p203 = scmp.ne.s32.totalorder %s192, %s193
      %p204 = scmp.eq.s32.totalorder %s30, 0
      %p205 = por %p203, %p204
      %p206 = scmp.ne.s32.totalorder %s192, %s193
      %p207 = scmp.eq.s32.totalorder %s31, 1
      %p208 = por %p206, %p207
      %p210 = scmp.ne.s32.totalorder %s193, %s209
      %p211 = scmp.eq.s32.totalorder %s31, 0
      %p212 = por %p210, %p211
      %s213 = ssub.s32 %s32, %s44
      %s214 = ssub.s32 %s33, %s40
      %s215 = sor.u32 %s213, %s214
      %p216 = scmp.eq.s32.totalorder %s215, 0
      %s218 = sadd.s32 %s217, 1
      %s219 = scalar_select %p216, %s217, %s218
      %p222 = pneg %p216
      %p223 = scmp.eq.s32.totalorder %s25, 1
      %p224 = por %p222, %p223
      %p225 = scmp.ne.s32.totalorder %s217, %s220
      %p226 = scmp.eq.s32.totalorder %s25, 0
      %p227 = por %p225, %p226
      %p228 = scmp.ne.s32.totalorder %s217, %s220
      %p229 = scmp.eq.s32.totalorder %s30, 1
      %p230 = por %p228, %p229
      %p231 = scmp.ne.s32.totalorder %s220, %s221
      %p232 = scmp.eq.s32.totalorder %s30, 0
      %p233 = por %p231, %p232
      %p234 = scmp.ne.s32.totalorder %s220, %s221
      %p235 = scmp.eq.s32.totalorder %s31, 1
      %p236 = por %p234, %p235
      %p238 = scmp.ne.s32.totalorder %s221, %s237
      %p239 = scmp.eq.s32.totalorder %s31, 0
      %p240 = por %p238, %p239
      %p241 = scmp.le.s32.totalorder 1, %s25
      %p242 = scmp.lt.s32.totalorder %s25, 3
      %p243 = pnand %p241, %p242
      %p244 = pneg %p243
      // Predicated region
      $region9: #{tpu_custom_call.1} parent=5 // pred_check
        _
      $region10: #{tpu_custom_call.1} parent=5 // pred_check_branch
        %246 = sbr.rel (%p243) target = $region12
      $region11: #{tpu_custom_call.1} parent=5 // pred_region
        %s247 = ssub.s32 %s25, 1
        // Predicated region
        $region13: #{tpu_custom_call.1} parent=11 // pred_check
          %p248 = pneg %p86
        $region14: #{tpu_custom_call.1} parent=11 // pred_check_branch
          %250 = sbr.rel (%p248) target = $region16
        $region15: #{tpu_custom_call.1} parent=11 // pred_region
          _
        $region16: #{tpu_custom_call.1} parent=11 // pred_fallthru
          _
        // Predicated region
        $region17: #{tpu_custom_call.1} parent=11 // pred_check
          %p251 = pneg %p107
        $region18: #{tpu_custom_call.1} parent=11 // pred_check_branch
          %253 = sbr.rel (%p251) target = $region20
        $region19: #{tpu_custom_call.1} parent=11 // pred_region
          %s255 = ssub.s32 256, 256
          %256 = vsyncadd [#allocation6], %s255
          %s257 = sshll.u32 [#allocation5], 4
          %s258 = int_to_ptr.vmem [resolvable:$true] %s257
          %263 = dma.hbm_to_vmem [thread:$0]  %s2, 256, %s258, [#allocation6], 64, 64, 4
        $region20: #{tpu_custom_call.1} parent=11 // pred_fallthru
          _
        // Predicated region
        $region21: #{tpu_custom_call.1} parent=11 // pred_check
          %p264 = pneg %p128
        $region22: #{tpu_custom_call.1} parent=11 // pred_check_branch
          %266 = sbr.rel (%p264) target = $region24
        $region23: #{tpu_custom_call.1} parent=11 // pred_region
          %s268 = ssub.s32 256, 256
          %269 = vsyncadd [#allocation6], %s268
          %s270 = sshll.u32 [#allocation7], 4
          %s271 = int_to_ptr.vmem [resolvable:$true] %s270
          %276 = dma.hbm_to_vmem [thread:$0]  %s3, 256, %s271, [#allocation6], 64, 64, 4
        $region24: #{tpu_custom_call.1} parent=11 // pred_fallthru
          _
        // Predicated region
        $region25: #{tpu_custom_call.1} parent=11 // pred_check
          %p277 = pneg %p149
        $region26: #{tpu_custom_call.1} parent=11 // pred_check_branch
          %279 = sbr.rel (%p277) target = $region28
        $region27: #{tpu_custom_call.1} parent=11 // pred_region
          %s281 = ssub.s32 256, 256
          %282 = vsyncadd [#allocation9], %s281
          %s283 = sshll.u32 [#allocation8], 4
          %s284 = int_to_ptr.vmem [resolvable:$true] %s283
          %289 = dma.hbm_to_vmem [thread:$0]  %s4, 256, %s284, [#allocation9], 64, 64, 4
        $region28: #{tpu_custom_call.1} parent=11 // pred_fallthru
          _
      $region12: #{tpu_custom_call.1} parent=5 // pred_fallthru
        _
      %p290 = scmp.lt.s32.totalorder %s25, 2
      // Predicated region
      $region29: #{tpu_custom_call.1} parent=5 // pred_check
        %p291 = pneg %p290
      $region30: #{tpu_custom_call.1} parent=5 // pred_check_branch
        %293 = sbr.rel (%p291) target = $region32
      $region31: #{tpu_custom_call.1} parent=5 // pred_region
        // Predicated region
        $region33: #{tpu_custom_call.1} parent=31 // pred_check
          %p294 = pneg %p59
        $region34: #{tpu_custom_call.1} parent=31 // pred_check_branch
          %296 = sbr.rel (%p294) target = $region36
        $region35: #{tpu_custom_call.1} parent=31 // pred_region
          %s297 = sand.u32 %s49, 1
          %s298 = scalar_lea.sflag [#allocation3], %s297
          %s299 = sand.u32 %s49, 1
          %s300 = smul.addr %s299, 8
          %s301 = scalar_lea.vmem [#allocation2], %s300
          %s303 = ssub.s32 128, 128
          %304 = vsyncadd %s298, %s303
          %s305 = sadd.s32 %s33, %s32
          %s306 = smul.addr %s305, 128
          %s307 = scalar_lea.hbm %s0, %s306
          %s309 = sshll.u32 %s301, 4
          %s310 = int_to_ptr.vmem [resolvable:$true] %s309
          %312 = dma.hbm_to_vmem [thread:$0]  %s307, 128, %s310, %s298
        $region36: #{tpu_custom_call.1} parent=31 // pred_fallthru
          _
      $region32: #{tpu_custom_call.1} parent=5 // pred_fallthru
        _
      %p313 = scmp.le.s32.totalorder 1, %s25
      %p314 = scmp.lt.s32.totalorder %s25, 3
      %p315 = pnand %p313, %p314
      %p316 = pneg %p315
      // Predicated region
      $region37: #{tpu_custom_call.1} parent=5 // pred_check
        _
      $region38: #{tpu_custom_call.1} parent=5 // pred_check_branch
        %318 = sbr.rel (%p315) target = $region40
      $region39: #{tpu_custom_call.1} parent=5 // pred_region
        %s319 = ssub.s32 %s25, 1
        %s320 = sand.u32 %s52, 1
        %s321 = scalar_lea.sflag [#allocation3], %s320
        %s322 = sand.u32 %s52, 1
        %s323 = smul.addr %s322, 8
        %s324 = scalar_lea.vmem [#allocation2], %s323
        // Predicated region
        $region41: #{tpu_custom_call.1} parent=39 // pred_check
          %p325 = pneg %p65
        $region42: #{tpu_custom_call.1} parent=39 // pred_check_branch
          %327 = sbr.rel (%p325) target = $region44
        $region43: #{tpu_custom_call.1} parent=39 // pred_region
          %328 = dma.done %s321, 128
        $region44: #{tpu_custom_call.1} parent=39 // pred_fallthru
          _
        // Predicated region
        $region45: #{tpu_custom_call.1} parent=39 // pred_check
          %p329 = pneg %p107
        $region46: #{tpu_custom_call.1} parent=39 // pred_check_branch
          %331 = sbr.rel (%p329) target = $region48
        $region47: #{tpu_custom_call.1} parent=39 // pred_region
          %332 = dma.done [#allocation6], 256
        $region48: #{tpu_custom_call.1} parent=39 // pred_fallthru
          _
        // Predicated region
        $region49: #{tpu_custom_call.1} parent=39 // pred_check
          %p333 = pneg %p128
        $region50: #{tpu_custom_call.1} parent=39 // pred_check_branch
          %335 = sbr.rel (%p333) target = $region52
        $region51: #{tpu_custom_call.1} parent=39 // pred_region
          %336 = dma.done [#allocation6], 256
        $region52: #{tpu_custom_call.1} parent=39 // pred_fallthru
          _
        // Predicated region
        $region53: #{tpu_custom_call.1} parent=39 // pred_check
          %p337 = pneg %p149
        $region54: #{tpu_custom_call.1} parent=39 // pred_check_branch
          %339 = sbr.rel (%p337) target = $region56
        $region55: #{tpu_custom_call.1} parent=39 // pred_region
          %340 = dma.done [#allocation9], 256
        $region56: #{tpu_custom_call.1} parent=39 // pred_fallthru
          _
        %s341 = sand.u32 %s52, 1
        %s342 = scalar_lea.sflag [#allocation3], %s341
        %s343 = sand.u32 %s52, 1
        %s344 = smul.addr %s343, 8
        %s345 = scalar_lea.vmem [#allocation2], %s344
        %p346 = pneg %p65
        %p347 = pneg %p62
        %p348 = pneg %p86
        %p349 = pneg %p83
        %p350 = pneg %p107
        %p351 = pneg %p104
        %p352 = pneg %p128
        %p353 = pneg %p125
        %p354 = pneg %p149
        %p355 = pneg %p146
        %p356 = pneg %p177
        %p357 = pneg %p174
        %s358 = sand.u32 %s164, 1
        %s359 = scalar_lea.sflag [#allocation4], %s358
        %s360 = sand.u32 %s164, 1
        %s361 = smul.addr %s360, 4
        %s362 = scalar_lea.vmem [#allocation10], %s361
        %p363 = pneg %p205
        %p364 = pneg %p202
        %s365 = sand.u32 %s30, 1
        %s366 = scalar_lea.sflag [#allocation12], %s365
        %s367 = sand.u32 %s192, 1
        %s368 = smul.addr %s367, 4
        %s369 = scalar_lea.vmem [#allocation11], %s368
        %p370 = pneg %p233
        %p371 = pneg %p230
        %s372 = sand.u32 %s30, 1
        %s373 = scalar_lea.sflag [#allocation12], %s372
        %s374 = sand.u32 %s220, 1
        %s375 = smul.addr %s374, 4
        %s376 = scalar_lea.vmem [#allocation13], %s375
        %v378 = vld [vmem:[%s324] sm:$0xff]
        %v379 = vmul.f32 %v378, %v378
        %vm380 = vcmask 261120
        %v381 = vsel %vm380, %v379, 0.0
        %382 = vadd.xlane.f32.xlu0 %v381
        %v383 = vpop.xlane.xlu0 %382
        %v384 = vmax.f32 %v383, 1e-24
        %v385 = vrsqrt.pop %v384
        %v386 = vmul.f32 %v378, %v385
        %v387 = vmul.f32 %v386, 5.656854
        %v388 = vld [vmem:[%s1] sm:$0x1]
        %v390 = vlaneseq
        %v391 = vshrl.u32 %v390, 7
        %v392 = vsub.s32 0, %v391
        %v393 = vrot.slane %v388, %v392
        %v395 = vmul.f32 %v387, %v393
        %v396 = vpack.c.bf16 %v395, %v395
        %v397 = vld [vmem:[#allocation5] sm:$0xf]
        %v398 = vld [vmem:[#allocation5 + $0x4] sm:$0xf]
        %v399 = vld [vmem:[#allocation5 + $0x8] sm:$0xf]
        %v400 = vld [vmem:[#allocation5 + $0xc] sm:$0xf]
        %v405 = vunpack.c.l.b16 %v397
        %v406 = vunpack.c.l.b16 %v398
        %v407 = vunpack.c.l.b16 %v399
        %v408 = vunpack.c.l.b16 %v400
        %v409 = vpack.c.b16 %v406, %v405
        %v410 = vpack.c.b16 %v408, %v407
        %v414 = vsel %vm380, %v396, 0
        %416 = vmatprep.subr.bf16.mxu0 0
        %417 = vmatpush1.bf16.msra.mxu0 0
        %418 = vmatprep.subr.bf16.mxu0 0
        %419 = vmatpush1.bf16.msra.mxu0 0
        %420 = vmatprep.subr.bf16.mxu0 0
        %421 = vmatpush1.bf16.msra.mxu0 0
        %422 = vmatprep.subr.bf16.mxu0 0
        %423 = vmatpush1.bf16.msra.mxu0 0
        %424 = vmatprep.subr.bf16.mxu0 0
        %425 = vmatpush1.bf16.msra.mxu0 0
        %426 = vmatprep.subr.bf16.mxu0 0
        %427 = vmatpush1.bf16.msra.mxu0 0
        %428 = vmatprep.subr.bf16.mxu0 0
        %429 = vmatpush1.bf16.msra.mxu0 %v410
        %430 = vmatprep.subr.bf16.mxu0 0
        %431 = vmatpush1.bf16.msra.mxu0 %v409
        %432 = vmatprep.subr.bf16.mxu0 0
        %433 = vmatpush2.bf16.msra.mxu0 0
        %434 = vmatprep.subr.bf16.mxu0 0
        %435 = vmatpush2.bf16.msra.mxu0 0
        %436 = vmatprep.subr.bf16.mxu0 0
        %437 = vmatpush2.bf16.msra.mxu0 0
        %438 = vmatprep.subr.bf16.mxu0 0
        %439 = vmatpush2.bf16.msra.mxu0 0
        %440 = vmatprep.subr.bf16.mxu0 0
        %441 = vmatpush2.bf16.msra.mxu0 0
        %442 = vmatprep.subr.bf16.mxu0 0
        %443 = vmatpush2.bf16.msra.mxu0 0
        %444 = vmatprep.subr.bf16.mxu0 0
        %445 = vmatpush2.bf16.msra.mxu0 0
        %446 = vmatprep.subr.bf16.mxu0 0
        %447 = vmatpush2.bf16.msra.mxu0 0
        %448 = vmatprep.mubr.bf16.mxu0 0
        %449 = vmatmul.mubr.bf16.gmra.mxu0 %v414
        %v450 = vpop.f32.mrf.mxu0
        %v451 = vadd.f32 0.0, %v450
        %v452 = vpop.f32.mrf.mxu0
        %v453 = vpop.f32.mrf.mxu0
        %v454 = vpop.f32.mrf.mxu0
        %455 = vdwg.mxu0
        %v456 = vpack.c.bf16 %v451, %v451
        %vm457 = vcmask 257024
        %458 = vst.msk [vmem:[%s362] sm:$0xf] %vm457, %v456
        %v459 = vld [vmem:[#allocation7] sm:$0xf]
        %v460 = vld [vmem:[#allocation7 + $0x4] sm:$0xf]
        %v461 = vld [vmem:[#allocation7 + $0x8] sm:$0xf]
        %v462 = vld [vmem:[#allocation7 + $0xc] sm:$0xf]
        %v467 = vunpack.c.l.b16 %v459
        %v468 = vunpack.c.l.b16 %v460
        %v469 = vunpack.c.l.b16 %v461
        %v470 = vunpack.c.l.b16 %v462
        %v471 = vpack.c.b16 %v468, %v467
        %v472 = vpack.c.b16 %v470, %v469
        %475 = vmatprep.subr.bf16.mxu0 0
        %476 = vmatpush1.bf16.msra.mxu0 0
        %477 = vmatprep.subr.bf16.mxu0 0
        %478 = vmatpush1.bf16.msra.mxu0 0
        %479 = vmatprep.subr.bf16.mxu0 0
        %480 = vmatpush1.bf16.msra.mxu0 0
        %481 = vmatprep.subr.bf16.mxu0 0
        %482 = vmatpush1.bf16.msra.mxu0 0
        %483 = vmatprep.subr.bf16.mxu0 0
        %484 = vmatpush1.bf16.msra.mxu0 0
        %485 = vmatprep.subr.bf16.mxu0 0
        %486 = vmatpush1.bf16.msra.mxu0 0
        %487 = vmatprep.subr.bf16.mxu0 0
        %488 = vmatpush1.bf16.msra.mxu0 %v472
        %489 = vmatprep.subr.bf16.mxu0 0
        %490 = vmatpush1.bf16.msra.mxu0 %v471
        %491 = vmatprep.subr.bf16.mxu0 0
        %492 = vmatpush2.bf16.msra.mxu0 0
        %493 = vmatprep.subr.bf16.mxu0 0
        %494 = vmatpush2.bf16.msra.mxu0 0
        %495 = vmatprep.subr.bf16.mxu0 0
        %496 = vmatpush2.bf16.msra.mxu0 0
        %497 = vmatprep.subr.bf16.mxu0 0
        %498 = vmatpush2.bf16.msra.mxu0 0
        %499 = vmatprep.subr.bf16.mxu0 0
        %500 = vmatpush2.bf16.msra.mxu0 0
        %501 = vmatprep.subr.bf16.mxu0 0
        %502 = vmatpush2.bf16.msra.mxu0 0
        %503 = vmatprep.subr.bf16.mxu0 0
        %504 = vmatpush2.bf16.msra.mxu0 0
        %505 = vmatprep.subr.bf16.mxu0 0
        %506 = vmatpush2.bf16.msra.mxu0 0
        %507 = vmatprep.mubr.bf16.mxu0 0
        %508 = vmatmul.mubr.bf16.gmra.mxu0 %v414
        %v509 = vpop.f32.mrf.mxu0
        %v510 = vadd.f32 0.0, %v509
        %v511 = vpop.f32.mrf.mxu0
        %v512 = vpop.f32.mrf.mxu0
        %v513 = vpop.f32.mrf.mxu0
        %514 = vdwg.mxu0
        %v515 = vpack.c.bf16 %v510, %v510
        %516 = vst.msk [vmem:[%s369] sm:$0xf] %vm457, %v515
        %v517 = vld [vmem:[#allocation8] sm:$0xf]
        %v518 = vld [vmem:[#allocation8 + $0x4] sm:$0xf]
        %v519 = vld [vmem:[#allocation8 + $0x8] sm:$0xf]
        %v520 = vld [vmem:[#allocation8 + $0xc] sm:$0xf]
        %v525 = vunpack.c.l.b16 %v517
        %v526 = vunpack.c.l.b16 %v518
        %v527 = vunpack.c.l.b16 %v519
        %v528 = vunpack.c.l.b16 %v520
        %v529 = vpack.c.b16 %v526, %v525
        %v530 = vpack.c.b16 %v528, %v527
        %533 = vmatprep.subr.bf16.mxu0 0
        %534 = vmatpush1.bf16.msra.mxu0 0
        %535 = vmatprep.subr.bf16.mxu0 0
        %536 = vmatpush1.bf16.msra.mxu0 0
        %537 = vmatprep.subr.bf16.mxu0 0
        %538 = vmatpush1.bf16.msra.mxu0 0
        %539 = vmatprep.subr.bf16.mxu0 0
        %540 = vmatpush1.bf16.msra.mxu0 0
        %541 = vmatprep.subr.bf16.mxu0 0
        %542 = vmatpush1.bf16.msra.mxu0 0
        %543 = vmatprep.subr.bf16.mxu0 0
        %544 = vmatpush1.bf16.msra.mxu0 0
        %545 = vmatprep.subr.bf16.mxu0 0
        %546 = vmatpush1.bf16.msra.mxu0 %v530
        %547 = vmatprep.subr.bf16.mxu0 0
        %548 = vmatpush1.bf16.msra.mxu0 %v529
        %549 = vmatprep.subr.bf16.mxu0 0
        %550 = vmatpush2.bf16.msra.mxu0 0
        %551 = vmatprep.subr.bf16.mxu0 0
        %552 = vmatpush2.bf16.msra.mxu0 0
        %553 = vmatprep.subr.bf16.mxu0 0
        %554 = vmatpush2.bf16.msra.mxu0 0
        %555 = vmatprep.subr.bf16.mxu0 0
        %556 = vmatpush2.bf16.msra.mxu0 0
        %557 = vmatprep.subr.bf16.mxu0 0
        %558 = vmatpush2.bf16.msra.mxu0 0
        %559 = vmatprep.subr.bf16.mxu0 0
        %560 = vmatpush2.bf16.msra.mxu0 0
        %561 = vmatprep.subr.bf16.mxu0 0
        %562 = vmatpush2.bf16.msra.mxu0 0
        %563 = vmatprep.subr.bf16.mxu0 0
        %564 = vmatpush2.bf16.msra.mxu0 0
        %565 = vmatprep.mubr.bf16.mxu0 0
        %566 = vmatmul.mubr.bf16.gmra.mxu0 %v414
        %v567 = vpop.f32.mrf.mxu0
        %v568 = vadd.f32 0.0, %v567
        %v569 = vpop.f32.mrf.mxu0
        %v570 = vpop.f32.mrf.mxu0
        %v571 = vpop.f32.mrf.mxu0
        %572 = vdwg.mxu0
        %v573 = vpack.c.bf16 %v568, %v568
        %574 = vst.msk [vmem:[%s376] sm:$0xf] %vm457, %v573
        %s575 = sand.u32 %s164, 1
        %s576 = scalar_lea.sflag [#allocation4], %s575
        %s577 = sand.u32 %s164, 1
        %s578 = smul.addr %s577, 4
        %s579 = scalar_lea.vmem [#allocation10], %s578
        %s580 = sand.u32 %s30, 1
        %s581 = scalar_lea.sflag [#allocation12], %s580
        %s582 = sand.u32 %s192, 1
        %s583 = smul.addr %s582, 4
        %s584 = scalar_lea.vmem [#allocation11], %s583
        %s585 = sand.u32 %s30, 1
        %s586 = scalar_lea.sflag [#allocation12], %s585
        %s587 = sand.u32 %s220, 1
        %s588 = smul.addr %s587, 4
        %s589 = scalar_lea.vmem [#allocation13], %s588
        // Predicated region
        $region57: #{tpu_custom_call.1} parent=39 // pred_check
          %p590 = pneg %p174
        $region58: #{tpu_custom_call.1} parent=39 // pred_check_branch
          %592 = sbr.rel (%p590) target = $region60
        $region59: #{tpu_custom_call.1} parent=39 // pred_region
          %s594 = ssub.s32 64, 64
          %595 = vsyncadd %s576, %s594
          %s596 = sadd.s32 %s35, %s34
          %s597 = smul.addr %s596, 64
          %s598 = scalar_lea.hbm %s5, %s597
          %s600 = sshll.u32 %s579, 4
          %s601 = int_to_ptr.vmem [resolvable:$true] %s600
          %603 = dma.vmem_to_hbm [thread:$0]  %s601, 64, %s598, %s576
        $region60: #{tpu_custom_call.1} parent=39 // pred_fallthru
          _
        // Predicated region
        $region61: #{tpu_custom_call.1} parent=39 // pred_check
          %p604 = pneg %p202
        $region62: #{tpu_custom_call.1} parent=39 // pred_check_branch
          %606 = sbr.rel (%p604) target = $region64
        $region63: #{tpu_custom_call.1} parent=39 // pred_region
          %s608 = ssub.s32 64, 64
          %609 = vsyncadd %s581, %s608
          %s610 = sadd.s32 %s35, %s34
          %s611 = smul.addr %s610, 64
          %s612 = scalar_lea.hbm %s6, %s611
          %s614 = sshll.u32 %s584, 4
          %s615 = int_to_ptr.vmem [resolvable:$true] %s614
          %617 = dma.vmem_to_hbm [thread:$0]  %s615, 64, %s612, %s581
        $region64: #{tpu_custom_call.1} parent=39 // pred_fallthru
          _
        // Predicated region
        $region65: #{tpu_custom_call.1} parent=39 // pred_check
          %p618 = pneg %p230
        $region66: #{tpu_custom_call.1} parent=39 // pred_check_branch
          %620 = sbr.rel (%p618) target = $region68
        $region67: #{tpu_custom_call.1} parent=39 // pred_region
          %s622 = ssub.s32 64, 64
          %623 = vsyncadd %s586, %s622
          %s624 = sadd.s32 %s35, %s34
          %s625 = smul.addr %s624, 64
          %s626 = scalar_lea.hbm %s7, %s625
          %s628 = sshll.u32 %s589, 4
          %s629 = int_to_ptr.vmem [resolvable:$true] %s628
          %631 = dma.vmem_to_hbm [thread:$0]  %s629, 64, %s626, %s586
        $region68: #{tpu_custom_call.1} parent=39 // pred_fallthru
          _
      $region40: #{tpu_custom_call.1} parent=5 // pred_fallthru
        _
      %p632 = scmp.le.s32.totalorder 2, %s25
      // Predicated region
      $region69: #{tpu_custom_call.1} parent=5 // pred_check
        %p633 = pneg %p632
      $region70: #{tpu_custom_call.1} parent=5 // pred_check_branch
        %635 = sbr.rel (%p633) target = $region72
      $region71: #{tpu_custom_call.1} parent=5 // pred_region
        %s636 = ssub.s32 %s25, 2
        // Predicated region
        $region73: #{tpu_custom_call.1} parent=71 // pred_check
          %p637 = pneg %p180
        $region74: #{tpu_custom_call.1} parent=71 // pred_check_branch
          %639 = sbr.rel (%p637) target = $region76
        $region75: #{tpu_custom_call.1} parent=71 // pred_region
          %s640 = sand.u32 %s165, 1
          %s641 = scalar_lea.sflag [#allocation4], %s640
          %s642 = sand.u32 %s165, 1
          %s643 = smul.addr %s642, 4
          %s644 = scalar_lea.vmem [#allocation10], %s643
          %645 = dma.done %s641, 64
        $region76: #{tpu_custom_call.1} parent=71 // pred_fallthru
          _
        // Predicated region
        $region77: #{tpu_custom_call.1} parent=71 // pred_check
          %p646 = pneg %p208
        $region78: #{tpu_custom_call.1} parent=71 // pred_check_branch
          %648 = sbr.rel (%p646) target = $region80
        $region79: #{tpu_custom_call.1} parent=71 // pred_region
          %s649 = sand.u32 %s31, 1
          %s650 = scalar_lea.sflag [#allocation12], %s649
          %s651 = sand.u32 %s193, 1
          %s652 = smul.addr %s651, 4
          %s653 = scalar_lea.vmem [#allocation11], %s652
          %654 = dma.done %s650, 64
        $region80: #{tpu_custom_call.1} parent=71 // pred_fallthru
          _
        // Predicated region
        $region81: #{tpu_custom_call.1} parent=71 // pred_check
          %p655 = pneg %p236
        $region82: #{tpu_custom_call.1} parent=71 // pred_check_branch
          %657 = sbr.rel (%p655) target = $region84
        $region83: #{tpu_custom_call.1} parent=71 // pred_region
          %s658 = sand.u32 %s31, 1
          %s659 = scalar_lea.sflag [#allocation12], %s658
          %s660 = sand.u32 %s221, 1
          %s661 = smul.addr %s660, 4
          %s662 = scalar_lea.vmem [#allocation13], %s661
          %663 = dma.done %s659, 64
        $region84: #{tpu_custom_call.1} parent=71 // pred_fallthru
          _
      $region72: #{tpu_custom_call.1} parent=5 // pred_fallthru
        _
    $region6: #{tpu_custom_call.1} parent=1 // loop_footer
      %s29 = sadd.s32 1, %s25
    $region7: #{tpu_custom_call.1} parent=1 // loop_footer_branch
      %24 = sbr.rel target = $region3
    $region8: #{tpu_custom_call.1} parent=1 // loop_exit
      _
    %664 = vsyncpa [#allocation3], 1
    %s665 = scalar_lea.sflag [#allocation3], 1
    %666 = vsyncpa %s665, 1
    %667 = vsyncpa [#allocation6], 1
    %668 = vsyncpa [#allocation9], 1
    %669 = vsyncpa [#allocation4], 1
    %s670 = scalar_lea.sflag [#allocation4], 1
    %671 = vsyncpa %s670, 1
    %672 = vsyncpa [#allocation12], 1
    %s673 = scalar_lea.sflag [#allocation12], 1
    %674 = vsyncpa %s673, 1

// kernel: tpu_custom_call.1
$region0: #{tpu_custom_call.1}
  #allocation0 [shape = 'u32[]', space=smem, size = 0x4, offset = 0x4, fixed_abs, tag = 'smem constant byte address 0x4 - core index']
  #allocation1 [shape = 'u32[144,128]{1,0:T(1,128)}', space=vmem, size = 0x12000, scoped, tag = 'internal scratch']
  %s0 = inlined_call_operand.hbm [shape: f32[2,8,32], index: 0, kind: input, shape index: {}]
  %s1 = inlined_call_operand.vmem [shape: f32[1,32], index: 1, kind: input, shape index: {}]
  %s2 = inlined_call_operand.hbm [shape: bf16[32,32], index: 2, kind: input, shape index: {}]
  %s3 = inlined_call_operand.hbm [shape: bf16[32,32], index: 3, kind: input, shape index: {}]
  %s4 = inlined_call_operand.hbm [shape: bf16[32,32], index: 4, kind: input, shape index: {}]
  %s5 = inlined_call_operand.hbm [shape: bf16[2,8,32], index: 5, kind: output, shape index: {0}]
  %s6 = inlined_call_operand.hbm [shape: bf16[2,8,32], index: 6, kind: output, shape index: {1}]
  %s7 = inlined_call_operand.hbm [shape: bf16[2,8,32], index: 7, kind: output, shape index: {2}]
  %8 = xla_tuple %s5, %s6, %s7
  %s9 = sld [smem:[#allocation0]]
  $region85: #{tpu_custom_call.1} parent=0
    _
  %s11 = ssub.s32 1, %s9
  %s12 = scalar_select 0, %s11, %s9
  $region1: #{tpu_custom_call.1} parent=0
    #allocation2 [shape = 'u8[8192]{0}', space=vmem, size = 0x2000, scoped, tag = 'input window, operand 0']
    #allocation3 [shape = 's32[2]{0}', space=sflag, size = 0x8, scoped, tag = 'scoped memory for tpu_custom_call.1']
    #allocation4 [shape = 's32[2]{0}', space=sflag, size = 0x8, scoped, tag = 'scoped memory for tpu_custom_call.1']
    #allocation5 [shape = 'u8[8192]{0}', space=vmem, size = 0x2000, scoped, tag = 'input window, operand 2, single buffered']
    #allocation6 [shape = 's32[1]{0}', space=sflag, size = 0x4, scoped, tag = 'scoped memory for tpu_custom_call.1']
    #allocation7 [shape = 'u8[8192]{0}', space=vmem, size = 0x2000, scoped, tag = 'input window, operand 3, single buffered']
    #allocation8 [shape = 'u8[8192]{0}', space=vmem, size = 0x2000, scoped, tag = 'input window, operand 4, single buffered']
    #allocation9 [shape = 's32[1]{0}', space=sflag, size = 0x4, scoped, tag = 'scoped memory for tpu_custom_call.1']
    #allocation10 [shape = 'u8[4096]{0}', space=vmem, size = 0x1000, scoped, tag = 'output window, operand 0']
    #allocation11 [shape = 'u8[4096]{0}', space=vmem, size = 0x1000, scoped, tag = 'output window, operand 1']
    #allocation12 [shape = 's32[2]{0}', space=sflag, size = 0x8, scoped, tag = 'scoped memory for tpu_custom_call.1']
    #allocation13 [shape = 'u8[4096]{0}', space=vmem, size = 0x1000, scoped, tag = 'output window, operand 2']
    %13 = vsyncpa [#allocation3], 0
    %s14 = scalar_lea.sflag [#allocation3], 1
    %15 = vsyncpa %s14, 0
    %16 = vsyncpa [#allocation6], 0
    %17 = vsyncpa [#allocation9], 0
    %18 = vsyncpa [#allocation4], 0
    %s19 = scalar_lea.sflag [#allocation4], 1
    %20 = vsyncpa %s19, 0
    %21 = vsyncpa [#allocation12], 0
    %s22 = scalar_lea.sflag [#allocation12], 1
    %23 = vsyncpa %s22, 0
    loop: start=0, step=1, limit=4
    $region2: #{tpu_custom_call.1} parent=1 // loop_pre_header
      _
    $region3: #{tpu_custom_call.1} parent=1 // loop_header
      %s25 = sphi 0, %s29
      %p26 = scmp.ge.s32.totalorder %s25, 4
      %s32 = sphi 0, %s44
      %s33 = sphi 0, %s40
      %s34 = sphi 0, %s32
      %s35 = sphi 0, %s33
      %s36 = sphi 0, %s34
      %s37 = sphi 0, %s35
      %s49 = sphi 0, %s51
      %s52 = sphi 0, %s49
      %s53 = sphi 0, %s52
      %s69 = sphi 0, %s53
      %s73 = sphi 0, %s73
      %s75 = sphi 0, %s73
      %s76 = sphi 0, %s75
      %s90 = sphi 0, %s76
      %s94 = sphi 0, %s94
      %s96 = sphi 0, %s94
      %s97 = sphi 0, %s96
      %s111 = sphi 0, %s97
      %s115 = sphi 0, %s115
      %s117 = sphi 0, %s115
      %s118 = sphi 0, %s117
      %s132 = sphi 0, %s118
      %s136 = sphi 0, %s136
      %s138 = sphi 0, %s136
      %s139 = sphi 0, %s138
      %s153 = sphi 0, %s139
      %s161 = sphi 0, %s163
      %s164 = sphi 0, %s161
      %s165 = sphi 0, %s164
      %s181 = sphi 0, %s165
      %s189 = sphi 0, %s191
      %s192 = sphi 0, %s189
      %s193 = sphi 0, %s192
      %s209 = sphi 0, %s193
      %s217 = sphi 0, %s219
      %s220 = sphi 0, %s217
      %s221 = sphi 0, %s220
      %s237 = sphi 0, %s221
    $region4: #{tpu_custom_call.1} parent=1 // loop_header_branch
      %28 = sbr.rel (%p26) target = $region8
    $region5: #{tpu_custom_call.1} parent=1 // loop_body
      %s30 = ssub.s32 %s25, 1
      %s31 = ssub.s32 %s25, 2
      %s38 = sadd.s32 1, %s33
      %p39 = scmp.ge.s32.totalorder %s38, 1
      %s40 = scalar_select %p39, 0, %s38
      %s41 = sadd.s32 1, %s32
      %s42 = scalar_select %p39, %s41, %s32
      %p43 = scmp.ge.s32.totalorder %s42, 2
      %s44 = scalar_select %p43, 0, %s42
      %s45 = ssub.s32 %s32, %s44
      %s46 = ssub.s32 %s33, %s40
      %s47 = sor.u32 %s45, %s46
      %p48 = scmp.eq.s32.totalorder %s47, 0
      %s50 = sadd.s32 %s49, 1
      %s51 = scalar_select %p48, %s49, %s50
      %p54 = pneg %p48
      %p55 = scmp.eq.s32.totalorder %s25, 1
      %p56 = por %p54, %p55
      %p57 = scmp.ne.s32.totalorder %s49, %s52
      %p58 = scmp.eq.s32.totalorder %s25, 0
      %p59 = por %p57, %p58
      %p60 = scmp.ne.s32.totalorder %s49, %s52
      %p61 = scmp.eq.s32.totalorder %s30, 1
      %p62 = por %p60, %p61
      %p63 = scmp.ne.s32.totalorder %s52, %s53
      %p64 = scmp.eq.s32.totalorder %s30, 0
      %p65 = por %p63, %p64
      %p66 = scmp.ne.s32.totalorder %s52, %s53
      %p67 = scmp.eq.s32.totalorder %s31, 1
      %p68 = por %p66, %p67
      %p70 = scmp.ne.s32.totalorder %s53, %s69
      %p71 = scmp.eq.s32.totalorder %s31, 0
      %p72 = por %p70, %p71
      %s74 = sadd.s32 %s73, 1
      %p77 = scmp.eq.s32.totalorder %s25, 1
      %p78 = scmp.ne.s32.totalorder %s73, %s75
      %p79 = scmp.eq.s32.totalorder %s25, 0
      %p80 = por %p78, %p79
      %p81 = scmp.ne.s32.totalorder %s73, %s75
      %p82 = scmp.eq.s32.totalorder %s30, 1
      %p83 = por %p81, %p82
      %p84 = scmp.ne.s32.totalorder %s75, %s76
      %p85 = scmp.eq.s32.totalorder %s30, 0
      %p86 = por %p84, %p85
      %p87 = scmp.ne.s32.totalorder %s75, %s76
      %p88 = scmp.eq.s32.totalorder %s31, 1
      %p89 = por %p87, %p88
      %p91 = scmp.ne.s32.totalorder %s76, %s90
      %p92 = scmp.eq.s32.totalorder %s31, 0
      %p93 = por %p91, %p92
      %s95 = sadd.s32 %s94, 1
      %p98 = scmp.eq.s32.totalorder %s25, 1
      %p99 = scmp.ne.s32.totalorder %s94, %s96
      %p100 = scmp.eq.s32.totalorder %s25, 0
      %p101 = por %p99, %p100
      %p102 = scmp.ne.s32.totalorder %s94, %s96
      %p103 = scmp.eq.s32.totalorder %s30, 1
      %p104 = por %p102, %p103
      %p105 = scmp.ne.s32.totalorder %s96, %s97
      %p106 = scmp.eq.s32.totalorder %s30, 0
      %p107 = por %p105, %p106
      %p108 = scmp.ne.s32.totalorder %s96, %s97
      %p109 = scmp.eq.s32.totalorder %s31, 1
      %p110 = por %p108, %p109
      %p112 = scmp.ne.s32.totalorder %s97, %s111
      %p113 = scmp.eq.s32.totalorder %s31, 0
      %p114 = por %p112, %p113
      %s116 = sadd.s32 %s115, 1
      %p119 = scmp.eq.s32.totalorder %s25, 1
      %p120 = scmp.ne.s32.totalorder %s115, %s117
      %p121 = scmp.eq.s32.totalorder %s25, 0
      %p122 = por %p120, %p121
      %p123 = scmp.ne.s32.totalorder %s115, %s117
      %p124 = scmp.eq.s32.totalorder %s30, 1
      %p125 = por %p123, %p124
      %p126 = scmp.ne.s32.totalorder %s117, %s118
      %p127 = scmp.eq.s32.totalorder %s30, 0
      %p128 = por %p126, %p127
      %p129 = scmp.ne.s32.totalorder %s117, %s118
      %p130 = scmp.eq.s32.totalorder %s31, 1
      %p131 = por %p129, %p130
      %p133 = scmp.ne.s32.totalorder %s118, %s132
      %p134 = scmp.eq.s32.totalorder %s31, 0
      %p135 = por %p133, %p134
      %s137 = sadd.s32 %s136, 1
      %p140 = scmp.eq.s32.totalorder %s25, 1
      %p141 = scmp.ne.s32.totalorder %s136, %s138
      %p142 = scmp.eq.s32.totalorder %s25, 0
      %p143 = por %p141, %p142
      %p144 = scmp.ne.s32.totalorder %s136, %s138
      %p145 = scmp.eq.s32.totalorder %s30, 1
      %p146 = por %p144, %p145
      %p147 = scmp.ne.s32.totalorder %s138, %s139
      %p148 = scmp.eq.s32.totalorder %s30, 0
      %p149 = por %p147, %p148
      %p150 = scmp.ne.s32.totalorder %s138, %s139
      %p151 = scmp.eq.s32.totalorder %s31, 1
      %p152 = por %p150, %p151
      %p154 = scmp.ne.s32.totalorder %s139, %s153
      %p155 = scmp.eq.s32.totalorder %s31, 0
      %p156 = por %p154, %p155
      %s157 = ssub.s32 %s32, %s44
      %s158 = ssub.s32 %s33, %s40
      %s159 = sor.u32 %s157, %s158
      %p160 = scmp.eq.s32.totalorder %s159, 0
      %s162 = sadd.s32 %s161, 1
      %s163 = scalar_select %p160, %s161, %s162
      %p166 = pneg %p160
      %p167 = scmp.eq.s32.totalorder %s25, 1
      %p168 = por %p166, %p167
      %p169 = scmp.ne.s32.totalorder %s161, %s164
      %p170 = scmp.eq.s32.totalorder %s25, 0
      %p171 = por %p169, %p170
      %p172 = scmp.ne.s32.totalorder %s161, %s164
      %p173 = scmp.eq.s32.totalorder %s30, 1
      %p174 = por %p172, %p173
      %p175 = scmp.ne.s32.totalorder %s164, %s165
      %p176 = scmp.eq.s32.totalorder %s30, 0
      %p177 = por %p175, %p176
      %p178 = scmp.ne.s32.totalorder %s164, %s165
      %p179 = scmp.eq.s32.totalorder %s31, 1
      %p180 = por %p178, %p179
      %p182 = scmp.ne.s32.totalorder %s165, %s181
      %p183 = scmp.eq.s32.totalorder %s31, 0
      %p184 = por %p182, %p183
      %s185 = ssub.s32 %s32, %s44
      %s186 = ssub.s32 %s33, %s40
      %s187 = sor.u32 %s185, %s186
      %p188 = scmp.eq.s32.totalorder %s187, 0
      %s190 = sadd.s32 %s189, 1
      %s191 = scalar_select %p188, %s189, %s190
      %p194 = pneg %p188
      %p195 = scmp.eq.s32.totalorder %s25, 1
      %p196 = por %p194, %p195
      %p197 = scmp.ne.s32.totalorder %s189, %s192
      %p198 = scmp.eq.s32.totalorder %s25, 0
      %p199 = por %p197, %p198
      %p200 = scmp.ne.s32.totalorder %s189, %s192
      %p201 = scmp.eq.s32.totalorder %s30, 1
      %p202 = por %p200, %p201
      %p203 = scmp.ne.s32.totalorder %s192, %s193
      %p204 = scmp.eq.s32.totalorder %s30, 0
      %p205 = por %p203, %p204
      %p206 = scmp.ne.s32.totalorder %s192, %s193
      %p207 = scmp.eq.s32.totalorder %s31, 1
      %p208 = por %p206, %p207
      %p210 = scmp.ne.s32.totalorder %s193, %s209
      %p211 = scmp.eq.s32.totalorder %s31, 0
      %p212 = por %p210, %p211
      %s213 = ssub.s32 %s32, %s44
      %s214 = ssub.s32 %s33, %s40
      %s215 = sor.u32 %s213, %s214
      %p216 = scmp.eq.s32.totalorder %s215, 0
      %s218 = sadd.s32 %s217, 1
      %s219 = scalar_select %p216, %s217, %s218
      %p222 = pneg %p216
      %p223 = scmp.eq.s32.totalorder %s25, 1
      %p224 = por %p222, %p223
      %p225 = scmp.ne.s32.totalorder %s217, %s220
      %p226 = scmp.eq.s32.totalorder %s25, 0
      %p227 = por %p225, %p226
      %p228 = scmp.ne.s32.totalorder %s217, %s220
      %p229 = scmp.eq.s32.totalorder %s30, 1
      %p230 = por %p228, %p229
      %p231 = scmp.ne.s32.totalorder %s220, %s221
      %p232 = scmp.eq.s32.totalorder %s30, 0
      %p233 = por %p231, %p232
      %p234 = scmp.ne.s32.totalorder %s220, %s221
      %p235 = scmp.eq.s32.totalorder %s31, 1
      %p236 = por %p234, %p235
      %p238 = scmp.ne.s32.totalorder %s221, %s237
      %p239 = scmp.eq.s32.totalorder %s31, 0
      %p240 = por %p238, %p239
      %p241 = scmp.le.s32.totalorder 1, %s25
      %p242 = scmp.lt.s32.totalorder %s25, 3
      %p243 = pnand %p241, %p242
      %p244 = pneg %p243
      // Predicated region
      $region9: #{tpu_custom_call.1} parent=5 // pred_check
        _
      $region10: #{tpu_custom_call.1} parent=5 // pred_check_branch
        %246 = sbr.rel (%p243) target = $region12
      $region11: #{tpu_custom_call.1} parent=5 // pred_region
        %s247 = ssub.s32 %s25, 1
        // Predicated region
        $region13: #{tpu_custom_call.1} parent=11 // pred_check
          %p248 = pneg %p86
        $region14: #{tpu_custom_call.1} parent=11 // pred_check_branch
          %250 = sbr.rel (%p248) target = $region16
        $region15: #{tpu_custom_call.1} parent=11 // pred_region
          _
        $region16: #{tpu_custom_call.1} parent=11 // pred_fallthru
          _
        // Predicated region
        $region17: #{tpu_custom_call.1} parent=11 // pred_check
          %p251 = pneg %p107
        $region18: #{tpu_custom_call.1} parent=11 // pred_check_branch
          %253 = sbr.rel (%p251) target = $region20
        $region19: #{tpu_custom_call.1} parent=11 // pred_region
          %s255 = ssub.s32 256, 256
          %256 = vsyncadd [#allocation6], %s255
          %s257 = sshll.u32 [#allocation5], 4
          %s258 = int_to_ptr.vmem [resolvable:$true] %s257
          %263 = dma.hbm_to_vmem [thread:$0]  %s2, 256, %s258, [#allocation6], 64, 64, 4
        $region20: #{tpu_custom_call.1} parent=11 // pred_fallthru
          _
        // Predicated region
        $region21: #{tpu_custom_call.1} parent=11 // pred_check
          %p264 = pneg %p128
        $region22: #{tpu_custom_call.1} parent=11 // pred_check_branch
          %266 = sbr.rel (%p264) target = $region24
        $region23: #{tpu_custom_call.1} parent=11 // pred_region
          %s268 = ssub.s32 256, 256
          %269 = vsyncadd [#allocation6], %s268
          %s270 = sshll.u32 [#allocation7], 4
          %s271 = int_to_ptr.vmem [resolvable:$true] %s270
          %276 = dma.hbm_to_vmem [thread:$0]  %s3, 256, %s271, [#allocation6], 64, 64, 4
        $region24: #{tpu_custom_call.1} parent=11 // pred_fallthru
          _
        // Predicated region
        $region25: #{tpu_custom_call.1} parent=11 // pred_check
          %p277 = pneg %p149
        $region26: #{tpu_custom_call.1} parent=11 // pred_check_branch
          %279 = sbr.rel (%p277) target = $region28
        $region27: #{tpu_custom_call.1} parent=11 // pred_region
          %s281 = ssub.s32 256, 256
          %282 = vsyncadd [#allocation9], %s281
          %s283 = sshll.u32 [#allocation8], 4
          %s284 = int_to_ptr.vmem [resolvable:$true] %s283
          %289 = dma.hbm_to_vmem [thread:$0]  %s4, 256, %s284, [#allocation9], 64, 64, 4
        $region28: #{tpu_custom_call.1} parent=11 // pred_fallthru
          _
      $region12: #{tpu_custom_call.1} parent=5 // pred_fallthru
        _
      %p290 = scmp.lt.s32.totalorder %s25, 2
      // Predicated region
      $region29: #{tpu_custom_call.1} parent=5 // pred_check
        %p291 = pneg %p290
      $region30: #{tpu_custom_call.1} parent=5 // pred_check_branch
        %293 = sbr.rel (%p291) target = $region32
      $region31: #{tpu_custom_call.1} parent=5 // pred_region
        // Predicated region
        $region33: #{tpu_custom_call.1} parent=31 // pred_check
          %p294 = pneg %p59
        $region34: #{tpu_custom_call.1} parent=31 // pred_check_branch
          %296 = sbr.rel (%p294) target = $region36
        $region35: #{tpu_custom_call.1} parent=31 // pred_region
          %s297 = sand.u32 %s49, 1
          %s298 = scalar_lea.sflag [#allocation3], %s297
          %s299 = sand.u32 %s49, 1
          %s300 = smul.addr %s299, 8
          %s301 = scalar_lea.vmem [#allocation2], %s300
          %s303 = ssub.s32 128, 128
          %304 = vsyncadd %s298, %s303
          %s305 = sadd.s32 %s33, %s32
          %s306 = smul.addr %s305, 128
          %s307 = scalar_lea.hbm %s0, %s306
          %s309 = sshll.u32 %s301, 4
          %s310 = int_to_ptr.vmem [resolvable:$true] %s309
          %312 = dma.hbm_to_vmem [thread:$0]  %s307, 128, %s310, %s298
        $region36: #{tpu_custom_call.1} parent=31 // pred_fallthru
          _
      $region32: #{tpu_custom_call.1} parent=5 // pred_fallthru
        _
      %p313 = scmp.le.s32.totalorder 1, %s25
      %p314 = scmp.lt.s32.totalorder %s25, 3
      %p315 = pnand %p313, %p314
      %p316 = pneg %p315
      // Predicated region
      $region37: #{tpu_custom_call.1} parent=5 // pred_check
        _
      $region38: #{tpu_custom_call.1} parent=5 // pred_check_branch
        %318 = sbr.rel (%p315) target = $region40
      $region39: #{tpu_custom_call.1} parent=5 // pred_region
        %s319 = ssub.s32 %s25, 1
        %s320 = sand.u32 %s52, 1
        %s321 = scalar_lea.sflag [#allocation3], %s320
        %s322 = sand.u32 %s52, 1
        %s323 = smul.addr %s322, 8
        %s324 = scalar_lea.vmem [#allocation2], %s323
        // Predicated region
        $region41: #{tpu_custom_call.1} parent=39 // pred_check
          %p325 = pneg %p65
        $region42: #{tpu_custom_call.1} parent=39 // pred_check_branch
          %327 = sbr.rel (%p325) target = $region44
        $region43: #{tpu_custom_call.1} parent=39 // pred_region
          %328 = dma.done %s321, 128
        $region44: #{tpu_custom_call.1} parent=39 // pred_fallthru
          _
        // Predicated region
        $region45: #{tpu_custom_call.1} parent=39 // pred_check
          %p329 = pneg %p107
        $region46: #{tpu_custom_call.1} parent=39 // pred_check_branch
          %331 = sbr.rel (%p329) target = $region48
        $region47: #{tpu_custom_call.1} parent=39 // pred_region
          %332 = dma.done [#allocation6], 256
        $region48: #{tpu_custom_call.1} parent=39 // pred_fallthru
          _
        // Predicated region
        $region49: #{tpu_custom_call.1} parent=39 // pred_check
          %p333 = pneg %p128
        $region50: #{tpu_custom_call.1} parent=39 // pred_check_branch
          %335 = sbr.rel (%p333) target = $region52
        $region51: #{tpu_custom_call.1} parent=39 // pred_region
          %336 = dma.done [#allocation6], 256
        $region52: #{tpu_custom_call.1} parent=39 // pred_fallthru
          _
        // Predicated region
        $region53: #{tpu_custom_call.1} parent=39 // pred_check
          %p337 = pneg %p149
        $region54: #{tpu_custom_call.1} parent=39 // pred_check_branch
          %339 = sbr.rel (%p337) target = $region56
        $region55: #{tpu_custom_call.1} parent=39 // pred_region
          %340 = dma.done [#allocation9], 256
        $region56: #{tpu_custom_call.1} parent=39 // pred_fallthru
          _
        %s341 = sand.u32 %s52, 1
        %s342 = scalar_lea.sflag [#allocation3], %s341
        %s343 = sand.u32 %s52, 1
        %s344 = smul.addr %s343, 8
        %s345 = scalar_lea.vmem [#allocation2], %s344
        %p346 = pneg %p65
        %p347 = pneg %p62
        %p348 = pneg %p86
        %p349 = pneg %p83
        %p350 = pneg %p107
        %p351 = pneg %p104
        %p352 = pneg %p128
        %p353 = pneg %p125
        %p354 = pneg %p149
        %p355 = pneg %p146
        %p356 = pneg %p177
        %p357 = pneg %p174
        %s358 = sand.u32 %s164, 1
        %s359 = scalar_lea.sflag [#allocation4], %s358
        %s360 = sand.u32 %s164, 1
        %s361 = smul.addr %s360, 4
        %s362 = scalar_lea.vmem [#allocation10], %s361
        %p363 = pneg %p205
        %p364 = pneg %p202
        %s365 = sand.u32 %s30, 1
        %s366 = scalar_lea.sflag [#allocation12], %s365
        %s367 = sand.u32 %s192, 1
        %s368 = smul.addr %s367, 4
        %s369 = scalar_lea.vmem [#allocation11], %s368
        %p370 = pneg %p233
        %p371 = pneg %p230
        %s372 = sand.u32 %s30, 1
        %s373 = scalar_lea.sflag [#allocation12], %s372
        %s374 = sand.u32 %s220, 1
        %s375 = smul.addr %s374, 4
        %s376 = scalar_lea.vmem [#allocation13], %s375
        %v378 = vld [vmem:[%s324] sm:$0xff]
        %v379 = vmul.f32 %v378, %v378
        %vm380 = vcmask 261120
        %v381 = vsel %vm380, %v379, 0.0
        %382 = vadd.xlane.f32.xlu0 %v381
        %v383 = vpop.xlane.xlu0 %382
        %v384 = vmax.f32 %v383, 1e-24
        %v385 = vrsqrt.pop %v384
        %v386 = vmul.f32 %v378, %v385
        %v387 = vmul.f32 %v386, 5.656854
        %v388 = vld [vmem:[%s1] sm:$0x1]
        %v390 = vlaneseq
        %v391 = vshrl.u32 %v390, 7
        %v392 = vsub.s32 0, %v391
        %v393 = vrot.slane %v388, %v392
        %v395 = vmul.f32 %v387, %v393
        %v396 = vpack.c.bf16 %v395, %v395
        %v397 = vld [vmem:[#allocation5] sm:$0xf]
        %v398 = vld [vmem:[#allocation5 + $0x4] sm:$0xf]
        %v399 = vld [vmem:[#allocation5 + $0x8] sm:$0xf]
        %v400 = vld [vmem:[#allocation5 + $0xc] sm:$0xf]
        %v405 = vunpack.c.l.b16 %v397
        %v406 = vunpack.c.l.b16 %v398
        %v407 = vunpack.c.l.b16 %v399
        %v408 = vunpack.c.l.b16 %v400
        %v409 = vpack.c.b16 %v406, %v405
        %v410 = vpack.c.b16 %v408, %v407
        %v414 = vsel %vm380, %v396, 0
        %416 = vmatprep.subr.bf16.mxu0 0
        %417 = vmatpush1.bf16.msra.mxu0 0
        %418 = vmatprep.subr.bf16.mxu0 0
        %419 = vmatpush1.bf16.msra.mxu0 0
        %420 = vmatprep.subr.bf16.mxu0 0
        %421 = vmatpush1.bf16.msra.mxu0 0
        %422 = vmatprep.subr.bf16.mxu0 0
        %423 = vmatpush1.bf16.msra.mxu0 0
        %424 = vmatprep.subr.bf16.mxu0 0
        %425 = vmatpush1.bf16.msra.mxu0 0
        %426 = vmatprep.subr.bf16.mxu0 0
        %427 = vmatpush1.bf16.msra.mxu0 0
        %428 = vmatprep.subr.bf16.mxu0 0
        %429 = vmatpush1.bf16.msra.mxu0 %v410
        %430 = vmatprep.subr.bf16.mxu0 0
        %431 = vmatpush1.bf16.msra.mxu0 %v409
        %432 = vmatprep.subr.bf16.mxu0 0
        %433 = vmatpush2.bf16.msra.mxu0 0
        %434 = vmatprep.subr.bf16.mxu0 0
        %435 = vmatpush2.bf16.msra.mxu0 0
        %436 = vmatprep.subr.bf16.mxu0 0
        %437 = vmatpush2.bf16.msra.mxu0 0
        %438 = vmatprep.subr.bf16.mxu0 0
        %439 = vmatpush2.bf16.msra.mxu0 0
        %440 = vmatprep.subr.bf16.mxu0 0
        %441 = vmatpush2.bf16.msra.mxu0 0
        %442 = vmatprep.subr.bf16.mxu0 0
        %443 = vmatpush2.bf16.msra.mxu0 0
        %444 = vmatprep.subr.bf16.mxu0 0
        %445 = vmatpush2.bf16.msra.mxu0 0
        %446 = vmatprep.subr.bf16.mxu0 0
        %447 = vmatpush2.bf16.msra.mxu0 0
        %448 = vmatprep.mubr.bf16.mxu0 0
        %449 = vmatmul.mubr.bf16.gmra.mxu0 %v414
        %v450 = vpop.f32.mrf.mxu0
        %v451 = vadd.f32 0.0, %v450
        %v452 = vpop.f32.mrf.mxu0
        %v453 = vpop.f32.mrf.mxu0
        %v454 = vpop.f32.mrf.mxu0
        %455 = vdwg.mxu0
        %v456 = vpack.c.bf16 %v451, %v451
        %vm457 = vcmask 257024
        %458 = vst.msk [vmem:[%s362] sm:$0xf] %vm457, %v456
        %v459 = vld [vmem:[#allocation7] sm:$0xf]
        %v460 = vld [vmem:[#allocation7 + $0x4] sm:$0xf]
        %v461 = vld [vmem:[#allocation7 + $0x8] sm:$0xf]
        %v462 = vld [vmem:[#allocation7 + $0xc] sm:$0xf]
        %v467 = vunpack.c.l.b16 %v459
        %v468 = vunpack.c.l.b16 %v460
        %v469 = vunpack.c.l.b16 %v461
        %v470 = vunpack.c.l.b16 %v462
        %v471 = vpack.c.b16 %v468, %v467
        %v472 = vpack.c.b16 %v470, %v469
        %475 = vmatprep.subr.bf16.mxu0 0
        %476 = vmatpush1.bf16.msra.mxu0 0
        %477 = vmatprep.subr.bf16.mxu0 0
        %478 = vmatpush1.bf16.msra.mxu0 0
        %479 = vmatprep.subr.bf16.mxu0 0
        %480 = vmatpush1.bf16.msra.mxu0 0
        %481 = vmatprep.subr.bf16.mxu0 0
        %482 = vmatpush1.bf16.msra.mxu0 0
        %483 = vmatprep.subr.bf16.mxu0 0
        %484 = vmatpush1.bf16.msra.mxu0 0
        %485 = vmatprep.subr.bf16.mxu0 0
        %486 = vmatpush1.bf16.msra.mxu0 0
        %487 = vmatprep.subr.bf16.mxu0 0
        %488 = vmatpush1.bf16.msra.mxu0 %v472
        %489 = vmatprep.subr.bf16.mxu0 0
        %490 = vmatpush1.bf16.msra.mxu0 %v471
        %491 = vmatprep.subr.bf16.mxu0 0
        %492 = vmatpush2.bf16.msra.mxu0 0
        %493 = vmatprep.subr.bf16.mxu0 0
        %494 = vmatpush2.bf16.msra.mxu0 0
        %495 = vmatprep.subr.bf16.mxu0 0
        %496 = vmatpush2.bf16.msra.mxu0 0
        %497 = vmatprep.subr.bf16.mxu0 0
        %498 = vmatpush2.bf16.msra.mxu0 0
        %499 = vmatprep.subr.bf16.mxu0 0
        %500 = vmatpush2.bf16.msra.mxu0 0
        %501 = vmatprep.subr.bf16.mxu0 0
        %502 = vmatpush2.bf16.msra.mxu0 0
        %503 = vmatprep.subr.bf16.mxu0 0
        %504 = vmatpush2.bf16.msra.mxu0 0
        %505 = vmatprep.subr.bf16.mxu0 0
        %506 = vmatpush2.bf16.msra.mxu0 0
        %507 = vmatprep.mubr.bf16.mxu0 0
        %508 = vmatmul.mubr.bf16.gmra.mxu0 %v414
        %v509 = vpop.f32.mrf.mxu0
        %v510 = vadd.f32 0.0, %v509
        %v511 = vpop.f32.mrf.mxu0
        %v512 = vpop.f32.mrf.mxu0
        %v513 = vpop.f32.mrf.mxu0
        %514 = vdwg.mxu0
        %v515 = vpack.c.bf16 %v510, %v510
        %516 = vst.msk [vmem:[%s369] sm:$0xf] %vm457, %v515
        %v517 = vld [vmem:[#allocation8] sm:$0xf]
        %v518 = vld [vmem:[#allocation8 + $0x4] sm:$0xf]
        %v519 = vld [vmem:[#allocation8 + $0x8] sm:$0xf]
        %v520 = vld [vmem:[#allocation8 + $0xc] sm:$0xf]
        %v525 = vunpack.c.l.b16 %v517
        %v526 = vunpack.c.l.b16 %v518
        %v527 = vunpack.c.l.b16 %v519
        %v528 = vunpack.c.l.b16 %v520
        %v529 = vpack.c.b16 %v526, %v525
        %v530 = vpack.c.b16 %v528, %v527
        %533 = vmatprep.subr.bf16.mxu0 0
        %534 = vmatpush1.bf16.msra.mxu0 0
        %535 = vmatprep.subr.bf16.mxu0 0
        %536 = vmatpush1.bf16.msra.mxu0 0
        %537 = vmatprep.subr.bf16.mxu0 0
        %538 = vmatpush1.bf16.msra.mxu0 0
        %539 = vmatprep.subr.bf16.mxu0 0
        %540 = vmatpush1.bf16.msra.mxu0 0
        %541 = vmatprep.subr.bf16.mxu0 0
        %542 = vmatpush1.bf16.msra.mxu0 0
        %543 = vmatprep.subr.bf16.mxu0 0
        %544 = vmatpush1.bf16.msra.mxu0 0
        %545 = vmatprep.subr.bf16.mxu0 0
        %546 = vmatpush1.bf16.msra.mxu0 %v530
        %547 = vmatprep.subr.bf16.mxu0 0
        %548 = vmatpush1.bf16.msra.mxu0 %v529
        %549 = vmatprep.subr.bf16.mxu0 0
        %550 = vmatpush2.bf16.msra.mxu0 0
        %551 = vmatprep.subr.bf16.mxu0 0
        %552 = vmatpush2.bf16.msra.mxu0 0
        %553 = vmatprep.subr.bf16.mxu0 0
        %554 = vmatpush2.bf16.msra.mxu0 0
        %555 = vmatprep.subr.bf16.mxu0 0
        %556 = vmatpush2.bf16.msra.mxu0 0
        %557 = vmatprep.subr.bf16.mxu0 0
        %558 = vmatpush2.bf16.msra.mxu0 0
        %559 = vmatprep.subr.bf16.mxu0 0
        %560 = vmatpush2.bf16.msra.mxu0 0
        %561 = vmatprep.subr.bf16.mxu0 0
        %562 = vmatpush2.bf16.msra.mxu0 0
        %563 = vmatprep.subr.bf16.mxu0 0
        %564 = vmatpush2.bf16.msra.mxu0 0
        %565 = vmatprep.mubr.bf16.mxu0 0
        %566 = vmatmul.mubr.bf16.gmra.mxu0 %v414
        %v567 = vpop.f32.mrf.mxu0
        %v568 = vadd.f32 0.0, %v567
        %v569 = vpop.f32.mrf.mxu0
        %v570 = vpop.f32.mrf.mxu0
        %v571 = vpop.f32.mrf.mxu0
        %572 = vdwg.mxu0
        %v573 = vpack.c.bf16 %v568, %v568
        %574 = vst.msk [vmem:[%s376] sm:$0xf] %vm457, %v573
        %s575 = sand.u32 %s164, 1
        %s576 = scalar_lea.sflag [#allocation4], %s575
        %s577 = sand.u32 %s164, 1
        %s578 = smul.addr %s577, 4
        %s579 = scalar_lea.vmem [#allocation10], %s578
        %s580 = sand.u32 %s30, 1
        %s581 = scalar_lea.sflag [#allocation12], %s580
        %s582 = sand.u32 %s192, 1
        %s583 = smul.addr %s582, 4
        %s584 = scalar_lea.vmem [#allocation11], %s583
        %s585 = sand.u32 %s30, 1
        %s586 = scalar_lea.sflag [#allocation12], %s585
        %s587 = sand.u32 %s220, 1
        %s588 = smul.addr %s587, 4
        %s589 = scalar_lea.vmem [#allocation13], %s588
        // Predicated region
        $region57: #{tpu_custom_call.1} parent=39 // pred_check
          %p590 = pneg %p174
        $region58: #{tpu_custom_call.1} parent=39 // pred_check_branch
          %592 = sbr.rel (%p590) target = $region60
        $region59: #{tpu_custom_call.1} parent=39 // pred_region
          %s594 = ssub.s32 64, 64
          %595 = vsyncadd %s576, %s594
          %s596 = sadd.s32 %s35, %s34
          %s597 = smul.addr %s596, 64
          %s598 = scalar_lea.hbm %s5, %s597
          %s600 = sshll.u32 %s579, 4
          %s601 = int_to_ptr.vmem [resolvable:$true] %s600
          %603 = dma.vmem_to_hbm [thread:$0]  %s601, 64, %s598, %s576
        $region60: #{tpu_custom_call.1} parent=39 // pred_fallthru
          _
        // Predicated region
        $region61: #{tpu_custom_call.1} parent=39 // pred_check
          %p604 = pneg %p202
        $region62: #{tpu_custom_call.1} parent=39 // pred_check_branch
          %606 = sbr.rel (%p604) target = $region64
        $region63: #{tpu_custom_call.1} parent=39 // pred_region
          %s608 = ssub.s32 64, 64
          %609 = vsyncadd %s581, %s608
          %s610 = sadd.s32 %s35, %s34
          %s611 = smul.addr %s610, 64
          %s612 = scalar_lea.hbm %s6, %s611
          %s614 = sshll.u32 %s584, 4
          %s615 = int_to_ptr.vmem [resolvable:$true] %s614
          %617 = dma.vmem_to_hbm [thread:$0]  %s615, 64, %s612, %s581
        $region64: #{tpu_custom_call.1} parent=39 // pred_fallthru
          _
        // Predicated region
        $region65: #{tpu_custom_call.1} parent=39 // pred_check
          %p618 = pneg %p230
        $region66: #{tpu_custom_call.1} parent=39 // pred_check_branch
          %620 = sbr.rel (%p618) target = $region68
        $region67: #{tpu_custom_call.1} parent=39 // pred_region
          %s622 = ssub.s32 64, 64
          %623 = vsyncadd %s586, %s622
          %s624 = sadd.s32 %s35, %s34
          %s625 = smul.addr %s624, 64
          %s626 = scalar_lea.hbm %s7, %s625
          %s628 = sshll.u32 %s589, 4
          %s629 = int_to_ptr.vmem [resolvable:$true] %s628
          %631 = dma.vmem_to_hbm [thread:$0]  %s629, 64, %s626, %s586
        $region68: #{tpu_custom_call.1} parent=39 // pred_fallthru
          _
      $region40: #{tpu_custom_call.1} parent=5 // pred_fallthru
        _
      %p632 = scmp.le.s32.totalorder 2, %s25
      // Predicated region
      $region69: #{tpu_custom_call.1} parent=5 // pred_check
        %p633 = pneg %p632
      $region70: #{tpu_custom_call.1} parent=5 // pred_check_branch
        %635 = sbr.rel (%p633) target = $region72
      $region71: #{tpu_custom_call.1} parent=5 // pred_region
        %s636 = ssub.s32 %s25, 2
        // Predicated region
        $region73: #{tpu_custom_call.1} parent=71 // pred_check
          %p637 = pneg %p180
        $region74: #{tpu_custom_call.1} parent=71 // pred_check_branch
          %639 = sbr.rel (%p637) target = $region76
        $region75: #{tpu_custom_call.1} parent=71 // pred_region
          %s640 = sand.u32 %s165, 1
          %s641 = scalar_lea.sflag [#allocation4], %s640
          %s642 = sand.u32 %s165, 1
          %s643 = smul.addr %s642, 4
          %s644 = scalar_lea.vmem [#allocation10], %s643
          %645 = dma.done %s641, 64
        $region76: #{tpu_custom_call.1} parent=71 // pred_fallthru
          _
        // Predicated region
        $region77: #{tpu_custom_call.1} parent=71 // pred_check
          %p646 = pneg %p208
        $region78: #{tpu_custom_call.1} parent=71 // pred_check_branch
          %648 = sbr.rel (%p646) target = $region80
        $region79: #{tpu_custom_call.1} parent=71 // pred_region
          %s649 = sand.u32 %s31, 1
          %s650 = scalar_lea.sflag [#allocation12], %s649
          %s651 = sand.u32 %s193, 1
          %s652 = smul.addr %s651, 4
          %s653 = scalar_lea.vmem [#allocation11], %s652
          %654 = dma.done %s650, 64
        $region80: #{tpu_custom_call.1} parent=71 // pred_fallthru
          _
        // Predicated region
        $region81: #{tpu_custom_call.1} parent=71 // pred_check
          %p655 = pneg %p236
        $region82: #{tpu_custom_call.1} parent=71 // pred_check_branch
          %657 = sbr.rel (%p655) target = $region84
        $region83: #{tpu_custom_call.1} parent=71 // pred_region
          %s658 = sand.u32 %s31, 1
          %s659 = scalar_lea.sflag [#allocation12], %s658
          %s660 = sand.u32 %s221, 1
          %s661 = smul.addr %s660, 4
          %s662 = scalar_lea.vmem [#allocation13], %s661
          %663 = dma.done %s659, 64
        $region84: #{tpu_custom_call.1} parent=71 // pred_fallthru
          _
      $region72: #{tpu_custom_call.1} parent=5 // pred_fallthru
        _
    $region6: #{tpu_custom_call.1} parent=1 // loop_footer
      %s29 = sadd.s32 1, %s25
    $region7: #{tpu_custom_call.1} parent=1 // loop_footer_branch
      %24 = sbr.rel target = $region3
    $region8: #{tpu_custom_call.1} parent=1 // loop_exit
      _
    %664 = vsyncpa [#allocation3], 1
    %s665 = scalar_lea.sflag [#allocation3], 1
    %666 = vsyncpa %s665, 1
    %667 = vsyncpa [#allocation6], 1
    %668 = vsyncpa [#allocation9], 1
    %669 = vsyncpa [#allocation4], 1
    %s670 = scalar_lea.sflag [#allocation4], 1
    %671 = vsyncpa %s670, 1
    %672 = vsyncpa [#allocation12], 1
    %s673 = scalar_lea.sflag [#allocation12], 1
    %674 = vsyncpa %s673, 1

</llo_original>
